<compile_context>
chip_gen: v7x
topology: tpu7x:2x2x1
jax: 0.10.0
libtpu: 0.0.40
codegen_flags: <defaults>
</compile_context>

<pallas_src>
import math
import functools

import numpy as np

import jax
import jax.numpy as jnp
from jax import lax
from jax.experimental import pallas as pl
from jax.experimental.pallas import tpu as pltpu


def _round_up(n, m):
    return ((n + m - 1) // m) * m


def embedding_kernel(x_ref, freqs_ref, phase_ref, e_class_ref, out_ref, *,
                     seq_len, attribute_num):
    # x_ref      : (bt, 1)            fused (batch*seq) rows for this block
    # freqs_ref  : (1, E_dims)        [f_0..f_{h-1}, f_0..f_{h-1}], f_k = 2^k*pi
    # phase_ref  : (1, E_dims)        [0]*h + [pi/2]*h
    # e_class_ref: (class_num, E_dims)
    # out_ref    : (bt, E_dims)
    bt = x_ref.shape[0]
    class_num = e_class_ref.shape[0]

    x = x_ref[...]                       # (bt, 1) f32
    freqs = freqs_ref[...]               # (1, E_dims) f32
    phase = phase_ref[...]               # (1, E_dims) f32
    e_class = e_class_ref[...]           # (class_num, E_dims) f32

    # Class-token mask for this block of fused rows:
    #   global row r -> sequence position r % seq_len; class token iff
    #   (r % seq_len) % attribute_num == 0.
    row0 = pl.program_id(0) * bt
    rows = row0 + lax.broadcasted_iota(jnp.int32, (bt, 1), 0)
    mask = ((rows % seq_len) % attribute_num) == 0            # (bt, 1) bool

    # ---- class (integer token) embedding: gather via one-hot matmul on MXU ----
    # TODO(synk): out-of-range class indices give a zero row here, whereas
    # torch.index_select would raise.
    idx = jnp.where(mask, x.astype(jnp.int32), 0)              # (bt, 1)
    cls = lax.broadcasted_iota(jnp.int32, (bt, class_num), 1)  # (bt, class_num)
    one_hot = (cls == idx).astype(jnp.float32)                 # (bt, class_num)
    int_emb = jnp.dot(one_hot, e_class,
                      preferred_element_type=jnp.float32)      # (bt, E_dims)

    # ---- float (sinusoidal) embedding: single fused sin over all E_dims lanes ----
    float_emb = jnp.sin(x * freqs + phase)                     # (bt, E_dims)

    out_ref[...] = jnp.where(mask, int_emb, float_emb).astype(out_ref.dtype)


def embedding_forward(x, e_class, *, attribute_num, row_block=256):
    B, S = x.shape
    class_num, e_dims = e_class.shape
    half = e_dims // 2
    N = B * S

    # Fused (batch*seq) row axis, tiled in blocks of `bt` rows (multiple of 8).
    bt = min(row_block, _round_up(N, 8))
    bt = max(8, (bt // 8) * 8)
    num_blocks = pl.cdiv(N, bt)
    n_pad = num_blocks * bt

    x_flat = x.reshape(N, 1).astype(jnp.float32)
    if n_pad != N:
        x_flat = jnp.pad(x_flat, ((0, n_pad - N), (0, 0)))

    # Trace-time constants: frequencies (computed in f64 like PyTorch, cast to
    # f32) and the phase that turns the cos half into a sin.
    freqs64 = (2.0 ** np.arange(half, dtype=np.float64)) * math.pi
    freqs_full = jnp.asarray(
        np.concatenate([freqs64, freqs64]).astype(np.float32)[None, :])     # (1, E_dims)
    phase = jnp.asarray(
        np.concatenate([np.zeros(half), np.full(half, math.pi / 2.0)])
        .astype(np.float32)[None, :])                                        # (1, E_dims)

    kernel = functools.partial(
        embedding_kernel, seq_len=S, attribute_num=attribute_num)

    out = pl.pallas_call(
        kernel,
        out_shape=jax.ShapeDtypeStruct((n_pad, e_dims), jnp.float32),
        grid_spec=pltpu.PrefetchScalarGridSpec(
            num_scalar_prefetch=0,
            grid=(num_blocks,),
            in_specs=[
                pl.BlockSpec((bt, 1), lambda i: (i, 0)),            # x rows
                pl.BlockSpec((1, e_dims), lambda i: (0, 0)),        # freqs (resident)
                pl.BlockSpec((1, e_dims), lambda i: (0, 0)),        # phase (resident)
                pl.BlockSpec((class_num, e_dims), lambda i: (0, 0)),  # E_class (resident)
            ],
            out_specs=pl.BlockSpec((bt, e_dims), lambda i: (i, 0)),
        ),
        compiler_params=pltpu.CompilerParams(
            dimension_semantics=("parallel",),   # independent row blocks (megacore on v7x)
        ),
    )(x_flat, freqs_full, phase, e_class.astype(jnp.float32))

    return out[:N].reshape(B, S, e_dims)


def embedding_reference(x, e_class, *, attribute_num):
    """Pure-JAX reference mirroring the PyTorch forward (f32 trig)."""
    B, S = x.shape
    class_num, e_dims = e_class.shape
    half = e_dims // 2
    mask = (jnp.arange(S) % attribute_num) == 0                      # (S,)
    idx = jnp.where(mask[None, :], x.astype(jnp.int32), 0)           # (B, S)
    int_emb = e_class[idx]                                           # (B, S, D)
    freqs = jnp.asarray(
        ((2.0 ** np.arange(half, dtype=np.float64)) * math.pi).astype(np.float32))
    arg = x[:, :, None].astype(jnp.float32) * freqs                  # (B, S, D/2)
    # torch.stack([sin, cos], dim=1).reshape(-1, E_dims) == concat along last dim
    float_emb = jnp.concatenate([jnp.sin(arg), jnp.cos(arg)], axis=-1)
    return jnp.where(mask[None, :, None], int_emb, float_emb)


if __name__ == "__main__":
    # Small shapes consistent with the module (E_dims multiple of 128 keeps the
    # output lane-dense; module default is 256): class_num=16, S=64, E_dims=128,
    # attribute_num=8, batch=4  ->  256 fused rows, 2 parallel grid steps.
    B, S = 4, 64
    class_num, e_dims, attribute_num = 16, 128, 8

    key = jax.random.PRNGKey(0)
    k_int, k_flt, k_emb = jax.random.split(key, 3)

    # Stand-in for torch.randn(class_num, E_dims).
    e_class = jax.random.normal(k_emb, (class_num, e_dims), dtype=jnp.float32)

    # Build input: class indices at mask positions, small floats elsewhere.
    # Floats are tiny so that 2^(E_dims/2-1)*pi*x stays in a range where f32
    # sin/cos are faithful (the original module relies on float64 here).
    ints = jax.random.randint(k_int, (B, S), 0, class_num).astype(jnp.float32)
    flts = jax.random.uniform(k_flt, (B, S), minval=0.0, maxval=1e-19,
                              dtype=jnp.float32)
    pos_is_class = (jnp.arange(S) % attribute_num) == 0
    x = jnp.where(pos_is_class[None, :], ints, flts)

    out = embedding_forward(x, e_class, attribute_num=attribute_num,
                            row_block=128)
    out = jax.block_until_ready(out)

    ref = embedding_reference(x, e_class, attribute_num=attribute_num)
    assert out.shape == (B, S, e_dims), out.shape
    assert out.dtype == jnp.float32, out.dtype
    if not jnp.allclose(out, ref, rtol=1e-3, atol=1e-3):
        raise AssertionError("Pallas kernel output mismatch vs reference")

    print("KERNEL_OK")
</pallas_src>

<mosaic_0001>
module attributes {stable_mosaic.version = 11 : i64} {
  func.func @embedding_kernel(%arg0: i32, %arg1: memref<128x1xf32, #tpu.memory_space<vmem>>, %arg2: memref<1x128xf32, #tpu.memory_space<vmem>>, %arg3: memref<1x128xf32, #tpu.memory_space<vmem>>, %arg4: memref<16x128xf32, #tpu.memory_space<vmem>>, %arg5: memref<128x128xf32, #tpu.memory_space<vmem>>) attributes {dimension_semantics = [#tpu.dimension_semantics<parallel>], iteration_bounds = array<i64: 2>, scalar_prefetch = 0 : i64, scratch_operands = 0 : i64, tpu.core_type = #tpu.core_type<tc>, window_params = [{transform_indices = @transform_0, window_bounds = array<i64: 128, 1>}, {pipeline_mode = #tpu.pipeline_mode<synchronous>, transform_indices = @transform_1, window_bounds = array<i64: 1, 128>}, {pipeline_mode = #tpu.pipeline_mode<synchronous>, transform_indices = @transform_2, window_bounds = array<i64: 1, 128>}, {pipeline_mode = #tpu.pipeline_mode<synchronous>, transform_indices = @transform_3, window_bounds = array<i64: 16, 128>}, {transform_indices = @transform_4, window_bounds = array<i64: 128, 128>}]} {
    %c0 = arith.constant 0 : index
    %c0_0 = arith.constant 0 : index
    %0 = vector.load %arg1[%c0, %c0_0] : memref<128x1xf32, #tpu.memory_space<vmem>>, vector<128x1xf32>
    %c0_1 = arith.constant 0 : index
    %c0_2 = arith.constant 0 : index
    %1 = vector.load %arg2[%c0_1, %c0_2] : memref<1x128xf32, #tpu.memory_space<vmem>>, vector<1x128xf32>
    %c0_3 = arith.constant 0 : index
    %c0_4 = arith.constant 0 : index
    %2 = vector.load %arg3[%c0_3, %c0_4] : memref<1x128xf32, #tpu.memory_space<vmem>>, vector<1x128xf32>
    %c0_5 = arith.constant 0 : index
    %c0_6 = arith.constant 0 : index
    %3 = vector.load %arg4[%c0_5, %c0_6] : memref<16x128xf32, #tpu.memory_space<vmem>>, vector<16x128xf32>
    %c128_i32 = arith.constant 128 : i32
    %4 = arith.muli %arg0, %c128_i32 : i32
    %5 = tpu.iota {dimensions = array<i32: 0>} : vector<128x1xi32>
    %6 = vector.broadcast %4 : i32 to vector<128x1xi32>
    %7 = arith.addi %6, %5 : vector<128x1xi32>
    %c64_i32 = arith.constant 64 : i32
    %c0_i32 = arith.constant 0 : i32
    %8 = arith.cmpi eq, %c64_i32, %c0_i32 : i32
    %c1_i32 = arith.constant 1 : i32
    %9 = arith.select %8, %c1_i32, %c64_i32 : i32
    %10 = vector.broadcast %9 : i32 to vector<128x1xi32>
    %11 = arith.remsi %7, %10 : vector<128x1xi32>
    %c0_i32_7 = arith.constant 0 : i32
    %12 = vector.broadcast %c0_i32_7 : i32 to vector<128x1xi32>
    %13 = arith.cmpi ne, %11, %12 : vector<128x1xi32>
    %c0_i32_8 = arith.constant 0 : i32
    %14 = vector.broadcast %c0_i32_8 : i32 to vector<128x1xi32>
    %15 = arith.cmpi slt, %11, %14 : vector<128x1xi32>
    %c0_i32_9 = arith.constant 0 : i32
    %16 = arith.cmpi slt, %9, %c0_i32_9 : i32
    %17 = vector.broadcast %16 : i1 to vector<128x1xi1>
    %18 = vector.broadcast %17 : vector<128x1xi1> to vector<128x1xi1>
    %19 = arith.xori %15, %18 : vector<128x1xi1>
    %20 = arith.andi %19, %13 : vector<128x1xi1>
    %21 = vector.broadcast %9 : i32 to vector<128x1xi32>
    %22 = arith.addi %11, %21 : vector<128x1xi32>
    %23 = arith.select %20, %22, %11 : vector<128x1xi1>, vector<128x1xi32>
    %c8_i32 = arith.constant 8 : i32
    %c0_i32_10 = arith.constant 0 : i32
    %24 = arith.cmpi eq, %c8_i32, %c0_i32_10 : i32
    %c1_i32_11 = arith.constant 1 : i32
    %25 = arith.select %24, %c1_i32_11, %c8_i32 : i32
    %26 = vector.broadcast %25 : i32 to vector<128x1xi32>
    %27 = arith.remsi %23, %26 : vector<128x1xi32>
    %c0_i32_12 = arith.constant 0 : i32
    %28 = vector.broadcast %c0_i32_12 : i32 to vector<128x1xi32>
    %29 = arith.cmpi ne, %27, %28 : vector<128x1xi32>
    %c0_i32_13 = arith.constant 0 : i32
    %30 = vector.broadcast %c0_i32_13 : i32 to vector<128x1xi32>
    %31 = arith.cmpi slt, %27, %30 : vector<128x1xi32>
    %c0_i32_14 = arith.constant 0 : i32
    %32 = arith.cmpi slt, %25, %c0_i32_14 : i32
    %33 = vector.broadcast %32 : i1 to vector<128x1xi1>
    %34 = vector.broadcast %33 : vector<128x1xi1> to vector<128x1xi1>
    %35 = arith.xori %31, %34 : vector<128x1xi1>
    %36 = arith.andi %35, %29 : vector<128x1xi1>
    %37 = vector.broadcast %25 : i32 to vector<128x1xi32>
    %38 = arith.addi %27, %37 : vector<128x1xi32>
    %39 = arith.select %36, %38, %27 : vector<128x1xi1>, vector<128x1xi32>
    %c0_i32_15 = arith.constant 0 : i32
    %40 = vector.broadcast %c0_i32_15 : i32 to vector<128x1xi32>
    %41 = arith.cmpi eq, %39, %40 : vector<128x1xi32>
    %42 = arith.fptosi %0 : vector<128x1xf32> to vector<128x1xi32>
    %c0_i32_16 = arith.constant 0 : i32
    %43 = vector.broadcast %c0_i32_16 : i32 to vector<128x1xi32>
    %44 = arith.select %41, %42, %43 : vector<128x1xi1>, vector<128x1xi32>
    %45 = tpu.iota {dimensions = array<i32: 1>} : vector<128x16xi32>
    %46 = vector.broadcast %44 : vector<128x1xi32> to vector<128x16xi32>
    %47 = arith.cmpi eq, %45, %46 : vector<128x16xi32>
    %48 = arith.extui %47 : vector<128x16xi1> to vector<128x16xi32>
    %49 = arith.sitofp %48 : vector<128x16xi32> to vector<128x16xf32>
    %cst = arith.constant dense<0.000000e+00> : vector<128x128xf32>
    %50 = tpu.matmul %49, %3, %cst {dimension_numbers = #tpu.dot_dimension_numbers<[1], [0], [0], [1], [0, 0, 1, 1], [], []>} : vector<128x16xf32>, vector<16x128xf32>, vector<128x128xf32> -> vector<128x128xf32>
    %51 = vector.broadcast %0 : vector<128x1xf32> to vector<128x128xf32>
    %52 = vector.broadcast %1 : vector<1x128xf32> to vector<128x128xf32>
    %53 = arith.mulf %51, %52 : vector<128x128xf32>
    %54 = vector.broadcast %2 : vector<1x128xf32> to vector<128x128xf32>
    %55 = arith.addf %53, %54 : vector<128x128xf32>
    %56 = math.sin %55 : vector<128x128xf32>
    %57 = vector.shape_cast %41 : vector<128x1xi1> to vector<128x1xi1>
    %58 = vector.broadcast %57 : vector<128x1xi1> to vector<128x128xi1>
    %59 = arith.select %58, %50, %56 : vector<128x128xi1>, vector<128x128xf32>
    %c0_17 = arith.constant 0 : index
    %c0_18 = arith.constant 0 : index
    %60 = vector.load %arg5[%c0_17, %c0_18] : memref<128x128xf32, #tpu.memory_space<vmem>>, vector<128x128xf32>
    tpu.vector_store %arg5[%c0_17, %c0_18], %59 {strides = array<i32>} : memref<128x128xf32, #tpu.memory_space<vmem>>, vector<128x128xf32>,
    return
  }
  func.func @transform_0(%arg0: i32) -> (i32, i32) {
    %c0_i32 = arith.constant 0 : i32
    %c0_i32_0 = arith.constant 0 : i32
    return %arg0, %c0_i32 : i32, i32
  }
  func.func @transform_1(%arg0: i32) -> (i32, i32) {
    %c0_i32 = arith.constant 0 : i32
    %c0_i32_0 = arith.constant 0 : i32
    %c0_i32_1 = arith.constant 0 : i32
    return %c0_i32, %c0_i32_0 : i32, i32
  }
  func.func @transform_2(%arg0: i32) -> (i32, i32) {
    %c0_i32 = arith.constant 0 : i32
    %c0_i32_0 = arith.constant 0 : i32
    %c0_i32_1 = arith.constant 0 : i32
    return %c0_i32, %c0_i32_0 : i32, i32
  }
  func.func @transform_3(%arg0: i32) -> (i32, i32) {
    %c0_i32 = arith.constant 0 : i32
    %c0_i32_0 = arith.constant 0 : i32
    %c0_i32_1 = arith.constant 0 : i32
    return %c0_i32, %c0_i32_0 : i32, i32
  }
  func.func @transform_4(%arg0: i32) -> (i32, i32) {
    %c0_i32 = arith.constant 0 : i32
    %c0_i32_0 = arith.constant 0 : i32
    return %arg0, %c0_i32 : i32, i32
  }
}

</mosaic_0001>

<llo_original>
// kernel: tpu_custom_call.1
$region0: #{tpu_custom_call.1}
  #allocation0 [shape = 'u32[]', space=smem, size = 0x4, offset = 0x4, fixed_abs, tag = 'smem constant byte address 0x4 - core index']
  #allocation1 [shape = 'u32[144,128]{1,0:T(1,128)}', space=vmem, size = 0x12000, scoped, tag = 'internal scratch']
  %s0 = inlined_call_operand.vmem [shape: f32[256,1], index: 0, kind: input, shape index: {}]
  %s1 = inlined_call_operand.vmem [shape: f32[1,128], index: 1, kind: input, shape index: {}]
  %s2 = inlined_call_operand.vmem [shape: f32[1,128], index: 2, kind: input, shape index: {}]
  %s3 = inlined_call_operand.vmem [shape: f32[16,128], index: 3, kind: input, shape index: {}]
  %s4 = inlined_call_operand.hbm [shape: f32[256,128], index: 4, kind: output, shape index: {}]
  %s5 = sld [smem:[#allocation0]]
  $region49: #{tpu_custom_call.1} parent=0
    _
  %s7 = ssub.s32 1, %s5
  %s8 = scalar_select 0, %s7, %s5
  $region1: #{tpu_custom_call.1} parent=0
    #allocation2 [shape = 'u8[131072]{0}', space=vmem, size = 0x20000, scoped, tag = 'output window, operand 0']
    #allocation3 [shape = 's32[2]{0}', space=sflag, size = 0x8, scoped, tag = 'scoped memory for tpu_custom_call.1']
    %9 = vsyncpa [#allocation3], 0
    %s10 = scalar_lea.sflag [#allocation3], 1
    %11 = vsyncpa %s10, 0
    loop: start=0, step=1, limit=4
    $region2: #{tpu_custom_call.1} parent=1 // loop_pre_header
      _
    $region3: #{tpu_custom_call.1} parent=1 // loop_header
      %s13 = sphi 0, %s17
      %p14 = scmp.ge.s32.totalorder %s13, 4
      %s23 = sphi 0, %s25
      %s26 = sphi 0, %s23
      %s27 = sphi 0, %s26
      %s43 = sphi 0, %s27
      %s47 = sphi 0, %s47
      %s49 = sphi 0, %s47
      %s50 = sphi 0, %s49
      %s64 = sphi 0, %s50
      %s68 = sphi 0, %s68
      %s70 = sphi 0, %s68
      %s71 = sphi 0, %s70
      %s85 = sphi 0, %s71
      %s89 = sphi 0, %s89
      %s91 = sphi 0, %s89
      %s92 = sphi 0, %s91
      %s106 = sphi 0, %s92
      %s112 = sphi 0, %s114
      %s115 = sphi 0, %s112
      %s116 = sphi 0, %s115
      %s132 = sphi 0, %s116
    $region4: #{tpu_custom_call.1} parent=1 // loop_header_branch
      %16 = sbr.rel (%p14) target = $region8
    $region5: #{tpu_custom_call.1} parent=1 // loop_body
      %s18 = ssub.s32 %s13, 1
      %s19 = ssub.s32 %s13, 2
      %s20 = sadd.s32 %s13, 1
      %s21 = ssub.s32 %s13, %s20
      %p22 = scmp.eq.s32.totalorder %s21, 0
      %s24 = sadd.s32 %s23, 1
      %s25 = scalar_select %p22, %s23, %s24
      %p28 = pneg %p22
      %p29 = scmp.eq.s32.totalorder %s13, 1
      %p30 = por %p28, %p29
      %p31 = scmp.ne.s32.totalorder %s23, %s26
      %p32 = scmp.eq.s32.totalorder %s13, 0
      %p33 = por %p31, %p32
      %p34 = scmp.ne.s32.totalorder %s23, %s26
      %p35 = scmp.eq.s32.totalorder %s18, 1
      %p36 = por %p34, %p35
      %p37 = scmp.ne.s32.totalorder %s26, %s27
      %p38 = scmp.eq.s32.totalorder %s18, 0
      %p39 = por %p37, %p38
      %p40 = scmp.ne.s32.totalorder %s26, %s27
      %p41 = scmp.eq.s32.totalorder %s19, 1
      %p42 = por %p40, %p41
      %p44 = scmp.ne.s32.totalorder %s27, %s43
      %p45 = scmp.eq.s32.totalorder %s19, 0
      %p46 = por %p44, %p45
      %s48 = sadd.s32 %s47, 1
      %p51 = scmp.eq.s32.totalorder %s13, 1
      %p52 = scmp.ne.s32.totalorder %s47, %s49
      %p53 = scmp.eq.s32.totalorder %s13, 0
      %p54 = por %p52, %p53
      %p55 = scmp.ne.s32.totalorder %s47, %s49
      %p56 = scmp.eq.s32.totalorder %s18, 1
      %p57 = por %p55, %p56
      %p58 = scmp.ne.s32.totalorder %s49, %s50
      %p59 = scmp.eq.s32.totalorder %s18, 0
      %p60 = por %p58, %p59
      %p61 = scmp.ne.s32.totalorder %s49, %s50
      %p62 = scmp.eq.s32.totalorder %s19, 1
      %p63 = por %p61, %p62
      %p65 = scmp.ne.s32.totalorder %s50, %s64
      %p66 = scmp.eq.s32.totalorder %s19, 0
      %p67 = por %p65, %p66
      %s69 = sadd.s32 %s68, 1
      %p72 = scmp.eq.s32.totalorder %s13, 1
      %p73 = scmp.ne.s32.totalorder %s68, %s70
      %p74 = scmp.eq.s32.totalorder %s13, 0
      %p75 = por %p73, %p74
      %p76 = scmp.ne.s32.totalorder %s68, %s70
      %p77 = scmp.eq.s32.totalorder %s18, 1
      %p78 = por %p76, %p77
      %p79 = scmp.ne.s32.totalorder %s70, %s71
      %p80 = scmp.eq.s32.totalorder %s18, 0
      %p81 = por %p79, %p80
      %p82 = scmp.ne.s32.totalorder %s70, %s71
      %p83 = scmp.eq.s32.totalorder %s19, 1
      %p84 = por %p82, %p83
      %p86 = scmp.ne.s32.totalorder %s71, %s85
      %p87 = scmp.eq.s32.totalorder %s19, 0
      %p88 = por %p86, %p87
      %s90 = sadd.s32 %s89, 1
      %p93 = scmp.eq.s32.totalorder %s13, 1
      %p94 = scmp.ne.s32.totalorder %s89, %s91
      %p95 = scmp.eq.s32.totalorder %s13, 0
      %p96 = por %p94, %p95
      %p97 = scmp.ne.s32.totalorder %s89, %s91
      %p98 = scmp.eq.s32.totalorder %s18, 1
      %p99 = por %p97, %p98
      %p100 = scmp.ne.s32.totalorder %s91, %s92
      %p101 = scmp.eq.s32.totalorder %s18, 0
      %p102 = por %p100, %p101
      %p103 = scmp.ne.s32.totalorder %s91, %s92
      %p104 = scmp.eq.s32.totalorder %s19, 1
      %p105 = por %p103, %p104
      %p107 = scmp.ne.s32.totalorder %s92, %s106
      %p108 = scmp.eq.s32.totalorder %s19, 0
      %p109 = por %p107, %p108
      %s110 = ssub.s32 %s13, %s20
      %p111 = scmp.eq.s32.totalorder %s110, 0
      %s113 = sadd.s32 %s112, 1
      %s114 = scalar_select %p111, %s112, %s113
      %p117 = pneg %p111
      %p118 = scmp.eq.s32.totalorder %s13, 1
      %p119 = por %p117, %p118
      %p120 = scmp.ne.s32.totalorder %s112, %s115
      %p121 = scmp.eq.s32.totalorder %s13, 0
      %p122 = por %p120, %p121
      %p123 = scmp.ne.s32.totalorder %s112, %s115
      %p124 = scmp.eq.s32.totalorder %s18, 1
      %p125 = por %p123, %p124
      %p126 = scmp.ne.s32.totalorder %s115, %s116
      %p127 = scmp.eq.s32.totalorder %s18, 0
      %p128 = por %p126, %p127
      %p129 = scmp.ne.s32.totalorder %s115, %s116
      %p130 = scmp.eq.s32.totalorder %s19, 1
      %p131 = por %p129, %p130
      %p133 = scmp.ne.s32.totalorder %s116, %s132
      %p134 = scmp.eq.s32.totalorder %s19, 0
      %p135 = por %p133, %p134
      %p136 = scmp.le.s32.totalorder 1, %s13
      %p137 = scmp.lt.s32.totalorder %s13, 3
      %p138 = pnand %p136, %p137
      %p139 = pneg %p138
      // Predicated region
      $region9: #{tpu_custom_call.1} parent=5 // pred_check
        _
      $region10: #{tpu_custom_call.1} parent=5 // pred_check_branch
        %141 = sbr.rel (%p138) target = $region12
      $region11: #{tpu_custom_call.1} parent=5 // pred_region
        %s142 = ssub.s32 %s13, 1
        // Predicated region
        $region13: #{tpu_custom_call.1} parent=11 // pred_check
          %p143 = pneg %p60
        $region14: #{tpu_custom_call.1} parent=11 // pred_check_branch
          %145 = sbr.rel (%p143) target = $region16
        $region15: #{tpu_custom_call.1} parent=11 // pred_region
          _
        $region16: #{tpu_custom_call.1} parent=11 // pred_fallthru
          _
        // Predicated region
        $region17: #{tpu_custom_call.1} parent=11 // pred_check
          %p146 = pneg %p81
        $region18: #{tpu_custom_call.1} parent=11 // pred_check_branch
          %148 = sbr.rel (%p146) target = $region20
        $region19: #{tpu_custom_call.1} parent=11 // pred_region
          _
        $region20: #{tpu_custom_call.1} parent=11 // pred_fallthru
          _
        // Predicated region
        $region21: #{tpu_custom_call.1} parent=11 // pred_check
          %p149 = pneg %p102
        $region22: #{tpu_custom_call.1} parent=11 // pred_check_branch
          %151 = sbr.rel (%p149) target = $region24
        $region23: #{tpu_custom_call.1} parent=11 // pred_region
          _
        $region24: #{tpu_custom_call.1} parent=11 // pred_fallthru
          _
      $region12: #{tpu_custom_call.1} parent=5 // pred_fallthru
        _
      %p152 = scmp.lt.s32.totalorder %s13, 2
      // Predicated region
      $region25: #{tpu_custom_call.1} parent=5 // pred_check
        %p153 = pneg %p152
      $region26: #{tpu_custom_call.1} parent=5 // pred_check_branch
        %155 = sbr.rel (%p153) target = $region28
      $region27: #{tpu_custom_call.1} parent=5 // pred_region
        // Predicated region
        $region29: #{tpu_custom_call.1} parent=27 // pred_check
          %p156 = pneg %p33
        $region30: #{tpu_custom_call.1} parent=27 // pred_check_branch
          %158 = sbr.rel (%p156) target = $region32
        $region31: #{tpu_custom_call.1} parent=27 // pred_region
          %s159 = smul.u32 16, %s13
          %p160 = scmp.lt.s32.totalorder %s159, 31
          %s161 = scalar_select %p160, %s159, 31
          %s162 = smul.addr %s161, 8
          %s163 = scalar_lea.vmem %s0, %s162
          %s164 = smul.u32 16, %s13
        $region32: #{tpu_custom_call.1} parent=27 // pred_fallthru
          _
      $region28: #{tpu_custom_call.1} parent=5 // pred_fallthru
        _
      %p165 = scmp.le.s32.totalorder 1, %s13
      %p166 = scmp.lt.s32.totalorder %s13, 3
      %p167 = pnand %p165, %p166
      %p168 = pneg %p167
      // Predicated region
      $region33: #{tpu_custom_call.1} parent=5 // pred_check
        _
      $region34: #{tpu_custom_call.1} parent=5 // pred_check_branch
        %170 = sbr.rel (%p167) target = $region36
      $region35: #{tpu_custom_call.1} parent=5 // pred_region
        %s171 = ssub.s32 %s13, 1
        %s172 = smul.u32 16, %s18
        %p173 = scmp.lt.s32.totalorder %s172, 31
        %s174 = scalar_select %p173, %s172, 31
        %s175 = smul.addr %s174, 8
        %s176 = scalar_lea.vmem %s0, %s175
        %p177 = pneg %p39
        %p178 = pneg %p36
        %p179 = pneg %p60
        %p180 = pneg %p57
        %p181 = pneg %p81
        %p182 = pneg %p78
        %p183 = pneg %p102
        %p184 = pneg %p99
        %p185 = pneg %p128
        %p186 = pneg %p125
        %s187 = sand.u32 %s115, 1
        %s188 = scalar_lea.sflag [#allocation3], %s187
        %s189 = sand.u32 %s115, 1
        %s190 = smul.addr %s189, 128
        %s191 = scalar_lea.vmem [#allocation2], %s190
        %s192 = smul.u32 16, %s18
        %p193 = scmp.lt.s32.totalorder %s192, 31
        %s194 = scalar_select %p193, %s192, 31
        %s195 = smul.addr %s194, 8
        %s196 = scalar_lea.vmem %s0, %s195
        %s197 = smul.u32 16, %s18
        %s198 = smul.u32 16, %s18
        %v199 = vld [vmem:[%s196] sm:$0xff]
        %v200 = vld [vmem:[%s196 + $0x8] sm:$0xff]
        %v201 = vld [vmem:[%s196 + $0x10] sm:$0xff]
        %v202 = vld [vmem:[%s196 + $0x18] sm:$0xff]
        %v203 = vld [vmem:[%s196 + $0x20] sm:$0xff]
        %v204 = vld [vmem:[%s196 + $0x28] sm:$0xff]
        %v205 = vld [vmem:[%s196 + $0x30] sm:$0xff]
        %v206 = vld [vmem:[%s196 + $0x38] sm:$0xff]
        %v207 = vld [vmem:[%s196 + $0x40] sm:$0xff]
        %v208 = vld [vmem:[%s196 + $0x48] sm:$0xff]
        %v209 = vld [vmem:[%s196 + $0x50] sm:$0xff]
        %v210 = vld [vmem:[%s196 + $0x58] sm:$0xff]
        %v211 = vld [vmem:[%s196 + $0x60] sm:$0xff]
        %v212 = vld [vmem:[%s196 + $0x68] sm:$0xff]
        %v213 = vld [vmem:[%s196 + $0x70] sm:$0xff]
        %v214 = vld [vmem:[%s196 + $0x78] sm:$0xff]
        %v215 = vld [vmem:[%s1] sm:$0x1]
        %v216 = vld [vmem:[%s2] sm:$0x1]
        %v217 = vld [vmem:[%s3] sm:$0xff]
        %v218 = vld [vmem:[%s3 + $0x8] sm:$0xff]
        %s219 = smul.u32 %s18, 128
        %v220 = vlaneseq
        %v221 = vshrl.u32 %v220, 7
        %v222 = vadd.s32 %v221, 8
        %v223 = vadd.s32 %v221, 16
        %v224 = vadd.s32 %v221, 24
        %v225 = vadd.s32 %v221, 32
        %v226 = vadd.s32 %v221, 40
        %v227 = vadd.s32 %v221, 48
        %v228 = vadd.s32 %v221, 56
        %v229 = vadd.s32 %v221, 64
        %v230 = vadd.s32 %v221, 72
        %v231 = vadd.s32 %v221, 80
        %v232 = vadd.s32 %v221, 88
        %v233 = vadd.s32 %v221, 96
        %v234 = vadd.s32 %v221, 104
        %v235 = vadd.s32 %v221, 112
        %v236 = vadd.s32 %v221, 120
        %v237 = vstv %s219
        %v238 = vadd.s32 %v237, %v221
        %v239 = vadd.s32 %v237, %v222
        %v240 = vadd.s32 %v237, %v223
        %v241 = vadd.s32 %v237, %v224
        %v242 = vadd.s32 %v237, %v225
        %v243 = vadd.s32 %v237, %v226
        %v244 = vadd.s32 %v237, %v227
        %v245 = vadd.s32 %v237, %v228
        %v246 = vadd.s32 %v237, %v229
        %v247 = vadd.s32 %v237, %v230
        %v248 = vadd.s32 %v237, %v231
        %v249 = vadd.s32 %v237, %v232
        %v250 = vadd.s32 %v237, %v233
        %v251 = vadd.s32 %v237, %v234
        %v252 = vadd.s32 %v237, %v235
        %v253 = vadd.s32 %v237, %v236
        %vm254 = vcmp.lt.s32.totalorder %v238, 0
        %v255 = vsub.s32 0, %v238
        %v256 = vsel %vm254, %v255, %v238
        %v257 = vshrl.u32 %v256, 6
        %v258 = vand.u32 %v256, 63
        %v259 = vsub.s32 0, %v258
        %v260 = vsel %vm254, %v259, %v258
        %vm261 = vcmp.lt.s32.totalorder %v239, 0
        %v262 = vsub.s32 0, %v239
        %v263 = vsel %vm261, %v262, %v239
        %v264 = vshrl.u32 %v263, 6
        %v265 = vand.u32 %v263, 63
        %v266 = vsub.s32 0, %v265
        %v267 = vsel %vm261, %v266, %v265
        %vm268 = vcmp.lt.s32.totalorder %v240, 0
        %v269 = vsub.s32 0, %v240
        %v270 = vsel %vm268, %v269, %v240
        %v271 = vshrl.u32 %v270, 6
        %v272 = vand.u32 %v270, 63
        %v273 = vsub.s32 0, %v272
        %v274 = vsel %vm268, %v273, %v272
        %vm275 = vcmp.lt.s32.totalorder %v241, 0
        %v276 = vsub.s32 0, %v241
        %v277 = vsel %vm275, %v276, %v241
        %v278 = vshrl.u32 %v277, 6
        %v279 = vand.u32 %v277, 63
        %v280 = vsub.s32 0, %v279
        %v281 = vsel %vm275, %v280, %v279
        %vm282 = vcmp.lt.s32.totalorder %v242, 0
        %v283 = vsub.s32 0, %v242
        %v284 = vsel %vm282, %v283, %v242
        %v285 = vshrl.u32 %v284, 6
        %v286 = vand.u32 %v284, 63
        %v287 = vsub.s32 0, %v286
        %v288 = vsel %vm282, %v287, %v286
        %vm289 = vcmp.lt.s32.totalorder %v243, 0
        %v290 = vsub.s32 0, %v243
        %v291 = vsel %vm289, %v290, %v243
        %v292 = vshrl.u32 %v291, 6
        %v293 = vand.u32 %v291, 63
        %v294 = vsub.s32 0, %v293
        %v295 = vsel %vm289, %v294, %v293
        %vm296 = vcmp.lt.s32.totalorder %v244, 0
        %v297 = vsub.s32 0, %v244
        %v298 = vsel %vm296, %v297, %v244
        %v299 = vshrl.u32 %v298, 6
        %v300 = vand.u32 %v298, 63
        %v301 = vsub.s32 0, %v300
        %v302 = vsel %vm296, %v301, %v300
        %vm303 = vcmp.lt.s32.totalorder %v245, 0
        %v304 = vsub.s32 0, %v245
        %v305 = vsel %vm303, %v304, %v245
        %v306 = vshrl.u32 %v305, 6
        %v307 = vand.u32 %v305, 63
        %v308 = vsub.s32 0, %v307
        %v309 = vsel %vm303, %v308, %v307
        %vm310 = vcmp.lt.s32.totalorder %v246, 0
        %v311 = vsub.s32 0, %v246
        %v312 = vsel %vm310, %v311, %v246
        %v313 = vshrl.u32 %v312, 6
        %v314 = vand.u32 %v312, 63
        %v315 = vsub.s32 0, %v314
        %v316 = vsel %vm310, %v315, %v314
        %vm317 = vcmp.lt.s32.totalorder %v247, 0
        %v318 = vsub.s32 0, %v247
        %v319 = vsel %vm317, %v318, %v247
        %v320 = vshrl.u32 %v319, 6
        %v321 = vand.u32 %v319, 63
        %v322 = vsub.s32 0, %v321
        %v323 = vsel %vm317, %v322, %v321
        %vm324 = vcmp.lt.s32.totalorder %v248, 0
        %v325 = vsub.s32 0, %v248
        %v326 = vsel %vm324, %v325, %v248
        %v327 = vshrl.u32 %v326, 6
        %v328 = vand.u32 %v326, 63
        %v329 = vsub.s32 0, %v328
        %v330 = vsel %vm324, %v329, %v328
        %vm331 = vcmp.lt.s32.totalorder %v249, 0
        %v332 = vsub.s32 0, %v249
        %v333 = vsel %vm331, %v332, %v249
        %v334 = vshrl.u32 %v333, 6
        %v335 = vand.u32 %v333, 63
        %v336 = vsub.s32 0, %v335
        %v337 = vsel %vm331, %v336, %v335
        %vm338 = vcmp.lt.s32.totalorder %v250, 0
        %v339 = vsub.s32 0, %v250
        %v340 = vsel %vm338, %v339, %v250
        %v341 = vshrl.u32 %v340, 6
        %v342 = vand.u32 %v340, 63
        %v343 = vsub.s32 0, %v342
        %v344 = vsel %vm338, %v343, %v342
        %vm345 = vcmp.lt.s32.totalorder %v251, 0
        %v346 = vsub.s32 0, %v251
        %v347 = vsel %vm345, %v346, %v251
        %v348 = vshrl.u32 %v347, 6
        %v349 = vand.u32 %v347, 63
        %v350 = vsub.s32 0, %v349
        %v351 = vsel %vm345, %v350, %v349
        %vm352 = vcmp.lt.s32.totalorder %v252, 0
        %v353 = vsub.s32 0, %v252
        %v354 = vsel %vm352, %v353, %v252
        %v355 = vshrl.u32 %v354, 6
        %v356 = vand.u32 %v354, 63
        %v357 = vsub.s32 0, %v356
        %v358 = vsel %vm352, %v357, %v356
        %vm359 = vcmp.lt.s32.totalorder %v253, 0
        %v360 = vsub.s32 0, %v253
        %v361 = vsel %vm359, %v360, %v253
        %v362 = vshrl.u32 %v361, 6
        %v363 = vand.u32 %v361, 63
        %v364 = vsub.s32 0, %v363
        %v365 = vsel %vm359, %v364, %v363
        %vm366 = vcmp.ne.s32.totalorder %v260, 0
        %vm367 = vcmp.ne.s32.totalorder %v267, 0
        %vm368 = vcmp.ne.s32.totalorder %v274, 0
        %vm369 = vcmp.ne.s32.totalorder %v281, 0
        %vm370 = vcmp.ne.s32.totalorder %v288, 0
        %vm371 = vcmp.ne.s32.totalorder %v295, 0
        %vm372 = vcmp.ne.s32.totalorder %v302, 0
        %vm373 = vcmp.ne.s32.totalorder %v309, 0
        %vm374 = vcmp.ne.s32.totalorder %v316, 0
        %vm375 = vcmp.ne.s32.totalorder %v323, 0
        %vm376 = vcmp.ne.s32.totalorder %v330, 0
        %vm377 = vcmp.ne.s32.totalorder %v337, 0
        %vm378 = vcmp.ne.s32.totalorder %v344, 0
        %vm379 = vcmp.ne.s32.totalorder %v351, 0
        %vm380 = vcmp.ne.s32.totalorder %v358, 0
        %vm381 = vcmp.ne.s32.totalorder %v365, 0
        %vm382 = vcmp.lt.s32.totalorder %v260, 0
        %vm383 = vcmp.lt.s32.totalorder %v267, 0
        %vm384 = vcmp.lt.s32.totalorder %v274, 0
        %vm385 = vcmp.lt.s32.totalorder %v281, 0
        %vm386 = vcmp.lt.s32.totalorder %v288, 0
        %vm387 = vcmp.lt.s32.totalorder %v295, 0
        %vm388 = vcmp.lt.s32.totalorder %v302, 0
        %vm389 = vcmp.lt.s32.totalorder %v309, 0
        %vm390 = vcmp.lt.s32.totalorder %v316, 0
        %vm391 = vcmp.lt.s32.totalorder %v323, 0
        %vm392 = vcmp.lt.s32.totalorder %v330, 0
        %vm393 = vcmp.lt.s32.totalorder %v337, 0
        %vm394 = vcmp.lt.s32.totalorder %v344, 0
        %vm395 = vcmp.lt.s32.totalorder %v351, 0
        %vm396 = vcmp.lt.s32.totalorder %v358, 0
        %vm397 = vcmp.lt.s32.totalorder %v365, 0
        %vm398 = vmand %vm382, %vm366
        %vm399 = vmand %vm383, %vm367
        %vm400 = vmand %vm384, %vm368
        %vm401 = vmand %vm385, %vm369
        %vm402 = vmand %vm386, %vm370
        %vm403 = vmand %vm387, %vm371
        %vm404 = vmand %vm388, %vm372
        %vm405 = vmand %vm389, %vm373
        %vm406 = vmand %vm390, %vm374
        %vm407 = vmand %vm391, %vm375
        %vm408 = vmand %vm392, %vm376
        %vm409 = vmand %vm393, %vm377
        %vm410 = vmand %vm394, %vm378
        %vm411 = vmand %vm395, %vm379
        %vm412 = vmand %vm396, %vm380
        %vm413 = vmand %vm397, %vm381
        %v414 = vadd.s32 %v260, 64
        %v415 = vadd.s32 %v267, 64
        %v416 = vadd.s32 %v274, 64
        %v417 = vadd.s32 %v281, 64
        %v418 = vadd.s32 %v288, 64
        %v419 = vadd.s32 %v295, 64
        %v420 = vadd.s32 %v302, 64
        %v421 = vadd.s32 %v309, 64
        %v422 = vadd.s32 %v316, 64
        %v423 = vadd.s32 %v323, 64
        %v424 = vadd.s32 %v330, 64
        %v425 = vadd.s32 %v337, 64
        %v426 = vadd.s32 %v344, 64
        %v427 = vadd.s32 %v351, 64
        %v428 = vadd.s32 %v358, 64
        %v429 = vadd.s32 %v365, 64
        %v430 = vsel %vm398, %v414, %v260
        %v431 = vsel %vm399, %v415, %v267
        %v432 = vsel %vm400, %v416, %v274
        %v433 = vsel %vm401, %v417, %v281
        %v434 = vsel %vm402, %v418, %v288
        %v435 = vsel %vm403, %v419, %v295
        %v436 = vsel %vm404, %v420, %v302
        %v437 = vsel %vm405, %v421, %v309
        %v438 = vsel %vm406, %v422, %v316
        %v439 = vsel %vm407, %v423, %v323
        %v440 = vsel %vm408, %v424, %v330
        %v441 = vsel %vm409, %v425, %v337
        %v442 = vsel %vm410, %v426, %v344
        %v443 = vsel %vm411, %v427, %v351
        %v444 = vsel %vm412, %v428, %v358
        %v445 = vsel %vm413, %v429, %v365
        %vm446 = vcmp.lt.s32.totalorder %v430, 0
        %v447 = vsub.s32 0, %v430
        %v448 = vsel %vm446, %v447, %v430
        %v449 = vshrl.u32 %v448, 3
        %v450 = vand.u32 %v448, 7
        %v451 = vsub.s32 0, %v450
        %v452 = vsel %vm446, %v451, %v450
        %vm453 = vcmp.lt.s32.totalorder %v431, 0
        %v454 = vsub.s32 0, %v431
        %v455 = vsel %vm453, %v454, %v431
        %v456 = vshrl.u32 %v455, 3
        %v457 = vand.u32 %v455, 7
        %v458 = vsub.s32 0, %v457
        %v459 = vsel %vm453, %v458, %v457
        %vm460 = vcmp.lt.s32.totalorder %v432, 0
        %v461 = vsub.s32 0, %v432
        %v462 = vsel %vm460, %v461, %v432
        %v463 = vshrl.u32 %v462, 3
        %v464 = vand.u32 %v462, 7
        %v465 = vsub.s32 0, %v464
        %v466 = vsel %vm460, %v465, %v464
        %vm467 = vcmp.lt.s32.totalorder %v433, 0
        %v468 = vsub.s32 0, %v433
        %v469 = vsel %vm467, %v468, %v433
        %v470 = vshrl.u32 %v469, 3
        %v471 = vand.u32 %v469, 7
        %v472 = vsub.s32 0, %v471
        %v473 = vsel %vm467, %v472, %v471
        %vm474 = vcmp.lt.s32.totalorder %v434, 0
        %v475 = vsub.s32 0, %v434
        %v476 = vsel %vm474, %v475, %v434
        %v477 = vshrl.u32 %v476, 3
        %v478 = vand.u32 %v476, 7
        %v479 = vsub.s32 0, %v478
        %v480 = vsel %vm474, %v479, %v478
        %vm481 = vcmp.lt.s32.totalorder %v435, 0
        %v482 = vsub.s32 0, %v435
        %v483 = vsel %vm481, %v482, %v435
        %v484 = vshrl.u32 %v483, 3
        %v485 = vand.u32 %v483, 7
        %v486 = vsub.s32 0, %v485
        %v487 = vsel %vm481, %v486, %v485
        %vm488 = vcmp.lt.s32.totalorder %v436, 0
        %v489 = vsub.s32 0, %v436
        %v490 = vsel %vm488, %v489, %v436
        %v491 = vshrl.u32 %v490, 3
        %v492 = vand.u32 %v490, 7
        %v493 = vsub.s32 0, %v492
        %v494 = vsel %vm488, %v493, %v492
        %vm495 = vcmp.lt.s32.totalorder %v437, 0
        %v496 = vsub.s32 0, %v437
        %v497 = vsel %vm495, %v496, %v437
        %v498 = vshrl.u32 %v497, 3
        %v499 = vand.u32 %v497, 7
        %v500 = vsub.s32 0, %v499
        %v501 = vsel %vm495, %v500, %v499
        %vm502 = vcmp.lt.s32.totalorder %v438, 0
        %v503 = vsub.s32 0, %v438
        %v504 = vsel %vm502, %v503, %v438
        %v505 = vshrl.u32 %v504, 3
        %v506 = vand.u32 %v504, 7
        %v507 = vsub.s32 0, %v506
        %v508 = vsel %vm502, %v507, %v506
        %vm509 = vcmp.lt.s32.totalorder %v439, 0
        %v510 = vsub.s32 0, %v439
        %v511 = vsel %vm509, %v510, %v439
        %v512 = vshrl.u32 %v511, 3
        %v513 = vand.u32 %v511, 7
        %v514 = vsub.s32 0, %v513
        %v515 = vsel %vm509, %v514, %v513
        %vm516 = vcmp.lt.s32.totalorder %v440, 0
        %v517 = vsub.s32 0, %v440
        %v518 = vsel %vm516, %v517, %v440
        %v519 = vshrl.u32 %v518, 3
        %v520 = vand.u32 %v518, 7
        %v521 = vsub.s32 0, %v520
        %v522 = vsel %vm516, %v521, %v520
        %vm523 = vcmp.lt.s32.totalorder %v441, 0
        %v524 = vsub.s32 0, %v441
        %v525 = vsel %vm523, %v524, %v441
        %v526 = vshrl.u32 %v525, 3
        %v527 = vand.u32 %v525, 7
        %v528 = vsub.s32 0, %v527
        %v529 = vsel %vm523, %v528, %v527
        %vm530 = vcmp.lt.s32.totalorder %v442, 0
        %v531 = vsub.s32 0, %v442
        %v532 = vsel %vm530, %v531, %v442
        %v533 = vshrl.u32 %v532, 3
        %v534 = vand.u32 %v532, 7
        %v535 = vsub.s32 0, %v534
        %v536 = vsel %vm530, %v535, %v534
        %vm537 = vcmp.lt.s32.totalorder %v443, 0
        %v538 = vsub.s32 0, %v443
        %v539 = vsel %vm537, %v538, %v443
        %v540 = vshrl.u32 %v539, 3
        %v541 = vand.u32 %v539, 7
        %v542 = vsub.s32 0, %v541
        %v543 = vsel %vm537, %v542, %v541
        %vm544 = vcmp.lt.s32.totalorder %v444, 0
        %v545 = vsub.s32 0, %v444
        %v546 = vsel %vm544, %v545, %v444
        %v547 = vshrl.u32 %v546, 3
        %v548 = vand.u32 %v546, 7
        %v549 = vsub.s32 0, %v548
        %v550 = vsel %vm544, %v549, %v548
        %vm551 = vcmp.lt.s32.totalorder %v445, 0
        %v552 = vsub.s32 0, %v445
        %v553 = vsel %vm551, %v552, %v445
        %v554 = vshrl.u32 %v553, 3
        %v555 = vand.u32 %v553, 7
        %v556 = vsub.s32 0, %v555
        %v557 = vsel %vm551, %v556, %v555
        %vm558 = vcmp.ne.s32.totalorder %v452, 0
        %vm559 = vcmp.ne.s32.totalorder %v459, 0
        %vm560 = vcmp.ne.s32.totalorder %v466, 0
        %vm561 = vcmp.ne.s32.totalorder %v473, 0
        %vm562 = vcmp.ne.s32.totalorder %v480, 0
        %vm563 = vcmp.ne.s32.totalorder %v487, 0
        %vm564 = vcmp.ne.s32.totalorder %v494, 0
        %vm565 = vcmp.ne.s32.totalorder %v501, 0
        %vm566 = vcmp.ne.s32.totalorder %v508, 0
        %vm567 = vcmp.ne.s32.totalorder %v515, 0
        %vm568 = vcmp.ne.s32.totalorder %v522, 0
        %vm569 = vcmp.ne.s32.totalorder %v529, 0
        %vm570 = vcmp.ne.s32.totalorder %v536, 0
        %vm571 = vcmp.ne.s32.totalorder %v543, 0
        %vm572 = vcmp.ne.s32.totalorder %v550, 0
        %vm573 = vcmp.ne.s32.totalorder %v557, 0
        %vm574 = vcmp.lt.s32.totalorder %v452, 0
        %vm575 = vcmp.lt.s32.totalorder %v459, 0
        %vm576 = vcmp.lt.s32.totalorder %v466, 0
        %vm577 = vcmp.lt.s32.totalorder %v473, 0
        %vm578 = vcmp.lt.s32.totalorder %v480, 0
        %vm579 = vcmp.lt.s32.totalorder %v487, 0
        %vm580 = vcmp.lt.s32.totalorder %v494, 0
        %vm581 = vcmp.lt.s32.totalorder %v501, 0
        %vm582 = vcmp.lt.s32.totalorder %v508, 0
        %vm583 = vcmp.lt.s32.totalorder %v515, 0
        %vm584 = vcmp.lt.s32.totalorder %v522, 0
        %vm585 = vcmp.lt.s32.totalorder %v529, 0
        %vm586 = vcmp.lt.s32.totalorder %v536, 0
        %vm587 = vcmp.lt.s32.totalorder %v543, 0
        %vm588 = vcmp.lt.s32.totalorder %v550, 0
        %vm589 = vcmp.lt.s32.totalorder %v557, 0
        %vm590 = vmand %vm574, %vm558
        %vm591 = vmand %vm575, %vm559
        %vm592 = vmand %vm576, %vm560
        %vm593 = vmand %vm577, %vm561
        %vm594 = vmand %vm578, %vm562
        %vm595 = vmand %vm579, %vm563
        %vm596 = vmand %vm580, %vm564
        %vm597 = vmand %vm581, %vm565
        %vm598 = vmand %vm582, %vm566
        %vm599 = vmand %vm583, %vm567
        %vm600 = vmand %vm584, %vm568
        %vm601 = vmand %vm585, %vm569
        %vm602 = vmand %vm586, %vm570
        %vm603 = vmand %vm587, %vm571
        %vm604 = vmand %vm588, %vm572
        %vm605 = vmand %vm589, %vm573
        %v606 = vadd.s32 %v452, 8
        %v607 = vadd.s32 %v459, 8
        %v608 = vadd.s32 %v466, 8
        %v609 = vadd.s32 %v473, 8
        %v610 = vadd.s32 %v480, 8
        %v611 = vadd.s32 %v487, 8
        %v612 = vadd.s32 %v494, 8
        %v613 = vadd.s32 %v501, 8
        %v614 = vadd.s32 %v508, 8
        %v615 = vadd.s32 %v515, 8
        %v616 = vadd.s32 %v522, 8
        %v617 = vadd.s32 %v529, 8
        %v618 = vadd.s32 %v536, 8
        %v619 = vadd.s32 %v543, 8
        %v620 = vadd.s32 %v550, 8
        %v621 = vadd.s32 %v557, 8
        %v622 = vsel %vm590, %v606, %v452
        %v623 = vsel %vm591, %v607, %v459
        %v624 = vsel %vm592, %v608, %v466
        %v625 = vsel %vm593, %v609, %v473
        %v626 = vsel %vm594, %v610, %v480
        %v627 = vsel %vm595, %v611, %v487
        %v628 = vsel %vm596, %v612, %v494
        %v629 = vsel %vm597, %v613, %v501
        %v630 = vsel %vm598, %v614, %v508
        %v631 = vsel %vm599, %v615, %v515
        %v632 = vsel %vm600, %v616, %v522
        %v633 = vsel %vm601, %v617, %v529
        %v634 = vsel %vm602, %v618, %v536
        %v635 = vsel %vm603, %v619, %v543
        %v636 = vsel %vm604, %v620, %v550
        %v637 = vsel %vm605, %v621, %v557
        %vm638 = vcmp.eq.s32.totalorder %v622, 0
        %vm639 = vcmp.eq.s32.totalorder %v623, 0
        %vm640 = vcmp.eq.s32.totalorder %v624, 0
        %vm641 = vcmp.eq.s32.totalorder %v625, 0
        %vm642 = vcmp.eq.s32.totalorder %v626, 0
        %vm643 = vcmp.eq.s32.totalorder %v627, 0
        %vm644 = vcmp.eq.s32.totalorder %v628, 0
        %vm645 = vcmp.eq.s32.totalorder %v629, 0
        %vm646 = vcmp.eq.s32.totalorder %v630, 0
        %vm647 = vcmp.eq.s32.totalorder %v631, 0
        %vm648 = vcmp.eq.s32.totalorder %v632, 0
        %vm649 = vcmp.eq.s32.totalorder %v633, 0
        %vm650 = vcmp.eq.s32.totalorder %v634, 0
        %vm651 = vcmp.eq.s32.totalorder %v635, 0
        %vm652 = vcmp.eq.s32.totalorder %v636, 0
        %vm653 = vcmp.eq.s32.totalorder %v637, 0
        %v654 = vcvt.f32.s32.to.zero.pseudo %v199
        %v655 = vcvt.f32.s32.to.zero.pseudo %v200
        %v656 = vcvt.f32.s32.to.zero.pseudo %v201
        %v657 = vcvt.f32.s32.to.zero.pseudo %v202
        %v658 = vcvt.f32.s32.to.zero.pseudo %v203
        %v659 = vcvt.f32.s32.to.zero.pseudo %v204
        %v660 = vcvt.f32.s32.to.zero.pseudo %v205
        %v661 = vcvt.f32.s32.to.zero.pseudo %v206
        %v662 = vcvt.f32.s32.to.zero.pseudo %v207
        %v663 = vcvt.f32.s32.to.zero.pseudo %v208
        %v664 = vcvt.f32.s32.to.zero.pseudo %v209
        %v665 = vcvt.f32.s32.to.zero.pseudo %v210
        %v666 = vcvt.f32.s32.to.zero.pseudo %v211
        %v667 = vcvt.f32.s32.to.zero.pseudo %v212
        %v668 = vcvt.f32.s32.to.zero.pseudo %v213
        %v669 = vcvt.f32.s32.to.zero.pseudo %v214
        %v670 = vsel %vm638, %v654, 0
        %v671 = vsel %vm639, %v655, 0
        %v672 = vsel %vm640, %v656, 0
        %v673 = vsel %vm641, %v657, 0
        %v674 = vsel %vm642, %v658, 0
        %v675 = vsel %vm643, %v659, 0
        %v676 = vsel %vm644, %v660, 0
        %v677 = vsel %vm645, %v661, 0
        %v678 = vsel %vm646, %v662, 0
        %v679 = vsel %vm647, %v663, 0
        %v680 = vsel %vm648, %v664, 0
        %v681 = vsel %vm649, %v665, 0
        %v682 = vsel %vm650, %v666, 0
        %v683 = vsel %vm651, %v667, 0
        %v684 = vsel %vm652, %v668, 0
        %v685 = vsel %vm653, %v669, 0
        %v686 = vlaneseq
        %v687 = vand.u32 %v686, 127
        %688 = vset.pattern.permute.xlu0 0
        %689 = vperm.xlu0 %688, %v670
        %v690 = vpop.permute.xlu0 %689
        %691 = vset.pattern.permute.xlu0 0
        %692 = vperm.xlu0 %691, %v671
        %v693 = vpop.permute.xlu0 %692
        %694 = vset.pattern.permute.xlu0 0
        %695 = vperm.xlu0 %694, %v672
        %v696 = vpop.permute.xlu0 %695
        %697 = vset.pattern.permute.xlu0 0
        %698 = vperm.xlu0 %697, %v673
        %v699 = vpop.permute.xlu0 %698
        %700 = vset.pattern.permute.xlu0 0
        %701 = vperm.xlu0 %700, %v674
        %v702 = vpop.permute.xlu0 %701
        %703 = vset.pattern.permute.xlu0 0
        %704 = vperm.xlu0 %703, %v675
        %v705 = vpop.permute.xlu0 %704
        %706 = vset.pattern.permute.xlu0 0
        %707 = vperm.xlu0 %706, %v676
        %v708 = vpop.permute.xlu0 %707
        %709 = vset.pattern.permute.xlu0 0
        %710 = vperm.xlu0 %709, %v677
        %v711 = vpop.permute.xlu0 %710
        %712 = vset.pattern.permute.xlu0 0
        %713 = vperm.xlu0 %712, %v678
        %v714 = vpop.permute.xlu0 %713
        %715 = vset.pattern.permute.xlu0 0
        %716 = vperm.xlu0 %715, %v679
        %v717 = vpop.permute.xlu0 %716
        %718 = vset.pattern.permute.xlu0 0
        %719 = vperm.xlu0 %718, %v680
        %v720 = vpop.permute.xlu0 %719
        %721 = vset.pattern.permute.xlu0 0
        %722 = vperm.xlu0 %721, %v681
        %v723 = vpop.permute.xlu0 %722
        %724 = vset.pattern.permute.xlu0 0
        %725 = vperm.xlu0 %724, %v682
        %v726 = vpop.permute.xlu0 %725
        %727 = vset.pattern.permute.xlu0 0
        %728 = vperm.xlu0 %727, %v683
        %v729 = vpop.permute.xlu0 %728
        %730 = vset.pattern.permute.xlu0 0
        %731 = vperm.xlu0 %730, %v684
        %v732 = vpop.permute.xlu0 %731
        %733 = vset.pattern.permute.xlu0 0
        %734 = vperm.xlu0 %733, %v685
        %v735 = vpop.permute.xlu0 %734
        %vm736 = vcmp.eq.s32.totalorder %v687, %v690
        %vm737 = vcmp.eq.s32.totalorder %v687, %v693
        %vm738 = vcmp.eq.s32.totalorder %v687, %v696
        %vm739 = vcmp.eq.s32.totalorder %v687, %v699
        %vm740 = vcmp.eq.s32.totalorder %v687, %v702
        %vm741 = vcmp.eq.s32.totalorder %v687, %v705
        %vm742 = vcmp.eq.s32.totalorder %v687, %v708
        %vm743 = vcmp.eq.s32.totalorder %v687, %v711
        %vm744 = vcmp.eq.s32.totalorder %v687, %v714
        %vm745 = vcmp.eq.s32.totalorder %v687, %v717
        %vm746 = vcmp.eq.s32.totalorder %v687, %v720
        %vm747 = vcmp.eq.s32.totalorder %v687, %v723
        %vm748 = vcmp.eq.s32.totalorder %v687, %v726
        %vm749 = vcmp.eq.s32.totalorder %v687, %v729
        %vm750 = vcmp.eq.s32.totalorder %v687, %v732
        %vm751 = vcmp.eq.s32.totalorder %v687, %v735
        %v752 = vsel %vm736, 1, 0
        %v753 = vsel %vm737, 1, 0
        %v754 = vsel %vm738, 1, 0
        %v755 = vsel %vm739, 1, 0
        %v756 = vsel %vm740, 1, 0
        %v757 = vsel %vm741, 1, 0
        %v758 = vsel %vm742, 1, 0
        %v759 = vsel %vm743, 1, 0
        %v760 = vsel %vm744, 1, 0
        %v761 = vsel %vm745, 1, 0
        %v762 = vsel %vm746, 1, 0
        %v763 = vsel %vm747, 1, 0
        %v764 = vsel %vm748, 1, 0
        %v765 = vsel %vm749, 1, 0
        %v766 = vsel %vm750, 1, 0
        %v767 = vsel %vm751, 1, 0
        %v768 = vcvt.s32.f32 %v752
        %v769 = vcvt.s32.f32 %v753
        %v770 = vcvt.s32.f32 %v754
        %v771 = vcvt.s32.f32 %v755
        %v772 = vcvt.s32.f32 %v756
        %v773 = vcvt.s32.f32 %v757
        %v774 = vcvt.s32.f32 %v758
        %v775 = vcvt.s32.f32 %v759
        %v776 = vcvt.s32.f32 %v760
        %v777 = vcvt.s32.f32 %v761
        %v778 = vcvt.s32.f32 %v762
        %v779 = vcvt.s32.f32 %v763
        %v780 = vcvt.s32.f32 %v764
        %v781 = vcvt.s32.f32 %v765
        %v782 = vcvt.s32.f32 %v766
        %v783 = vcvt.s32.f32 %v767
        %vm784 = vcmask 130048
        %v786 = vsel %vm784, %v768, 0
        %v789 = vsel %vm784, %v769, 0
        %v792 = vsel %vm784, %v770, 0
        %v795 = vsel %vm784, %v771, 0
        %v798 = vsel %vm784, %v772, 0
        %v801 = vsel %vm784, %v773, 0
        %v804 = vsel %vm784, %v774, 0
        %v807 = vsel %vm784, %v775, 0
        %v810 = vsel %vm784, %v776, 0
        %v813 = vsel %vm784, %v777, 0
        %v816 = vsel %vm784, %v778, 0
        %v819 = vsel %vm784, %v779, 0
        %v822 = vsel %vm784, %v780, 0
        %v825 = vsel %vm784, %v781, 0
        %v828 = vsel %vm784, %v782, 0
        %v831 = vsel %vm784, %v783, 0
        %833 = vmatprep.subr.mxu0 0.0
        %834 = vmatpush1.msra.mxu0 %v217
        %835 = vmatprep.subr.mxu0 0.0
        %836 = vmatpush1.msra.mxu0 %v218
        %837 = vmatprep.subr.mxu0 0.0
        %838 = vmatpush1.msra.mxu0 0.0
        %839 = vmatprep.subr.mxu0 0.0
        %840 = vmatpush1.msra.mxu0 0.0
        %841 = vmatprep.subr.mxu0 0.0
        %842 = vmatpush1.msra.mxu0 0.0
        %843 = vmatprep.subr.mxu0 0.0
        %844 = vmatpush1.msra.mxu0 0.0
        %845 = vmatprep.subr.mxu0 0.0
        %846 = vmatpush1.msra.mxu0 0.0
        %847 = vmatprep.subr.mxu0 0.0
        %848 = vmatpush1.msra.mxu0 0.0
        %849 = vmatprep.subr.mxu0 0.0
        %850 = vmatpush1.msra.mxu0 0.0
        %851 = vmatprep.subr.mxu0 0.0
        %852 = vmatpush1.msra.mxu0 0.0
        %853 = vmatprep.subr.mxu0 0.0
        %854 = vmatpush1.msra.mxu0 0.0
        %855 = vmatprep.subr.mxu0 0.0
        %856 = vmatpush1.msra.mxu0 0.0
        %857 = vmatprep.subr.mxu0 0.0
        %858 = vmatpush1.msra.mxu0 0.0
        %859 = vmatprep.subr.mxu0 0.0
        %860 = vmatpush1.msra.mxu0 0.0
        %861 = vmatprep.subr.mxu0 0.0
        %862 = vmatpush1.msra.mxu0 0.0
        %863 = vmatprep.subr.mxu0 0.0
        %864 = vmatpush1.msra.mxu0 0.0
        %865 = vmatprep.subr.mxu0 0.0
        %866 = vmatpush1.msra.mxu0 0.0
        %867 = vmatprep.subr.mxu0 0.0
        %868 = vmatpush1.msra.mxu0 0.0
        %869 = vmatprep.subr.mxu0 0.0
        %870 = vmatpush1.msra.mxu0 0.0
        %871 = vmatprep.subr.mxu0 0.0
        %872 = vmatpush1.msra.mxu0 0.0
        %873 = vmatprep.subr.mxu0 0.0
        %874 = vmatpush1.msra.mxu0 0.0
        %875 = vmatprep.subr.mxu0 0.0
        %876 = vmatpush1.msra.mxu0 0.0
        %877 = vmatprep.subr.mxu0 0.0
        %878 = vmatpush1.msra.mxu0 0.0
        %879 = vmatprep.subr.mxu0 0.0
        %880 = vmatpush1.msra.mxu0 0.0
        %881 = vmatprep.subr.mxu0 0.0
        %882 = vmatpush1.msra.mxu0 0.0
        %883 = vmatprep.subr.mxu0 0.0
        %884 = vmatpush1.msra.mxu0 0.0
        %885 = vmatprep.subr.mxu0 0.0
        %886 = vmatpush1.msra.mxu0 0.0
        %887 = vmatprep.subr.mxu0 0.0
        %888 = vmatpush1.msra.mxu0 0.0
        %889 = vmatprep.subr.mxu0 0.0
        %890 = vmatpush1.msra.mxu0 0.0
        %891 = vmatprep.subr.mxu0 0.0
        %892 = vmatpush1.msra.mxu0 0.0
        %893 = vmatprep.subr.mxu0 0.0
        %894 = vmatpush1.msra.mxu0 0.0
        %895 = vmatprep.subr.mxu0 0.0
        %896 = vmatpush1.msra.mxu0 0.0
        %897 = vmatprep.mubr.f32.mxu0 0.0
        %898 = vmatmul.mubr.f32.gmra.mrb[0].mxu0 %v786
        %v899 = vpop.f32.mrb[0].mxu0
        %v900 = vadd.f32 0.0, %v899
        %v901 = vpop.f32.mrb[0].mxu0
        %902 = vmatprep.mubr.f32.mxu0 0.0
        %903 = vmatmul.mubr.f32.gmra.mrb[0].mxu0 %v789
        %v904 = vpop.f32.mrb[0].mxu0
        %v905 = vadd.f32 0.0, %v904
        %v906 = vpop.f32.mrb[0].mxu0
        %907 = vmatprep.mubr.f32.mxu0 0.0
        %908 = vmatmul.mubr.f32.gmra.mrb[0].mxu0 %v792
        %v909 = vpop.f32.mrb[0].mxu0
        %v910 = vadd.f32 0.0, %v909
        %v911 = vpop.f32.mrb[0].mxu0
        %912 = vmatprep.mubr.f32.mxu0 0.0
        %913 = vmatmul.mubr.f32.gmra.mrb[0].mxu0 %v795
        %v914 = vpop.f32.mrb[0].mxu0
        %v915 = vadd.f32 0.0, %v914
        %v916 = vpop.f32.mrb[0].mxu0
        %917 = vmatprep.mubr.f32.mxu0 0.0
        %918 = vmatmul.mubr.f32.gmra.mrb[0].mxu0 %v798
        %v919 = vpop.f32.mrb[0].mxu0
        %v920 = vadd.f32 0.0, %v919
        %v921 = vpop.f32.mrb[0].mxu0
        %922 = vmatprep.mubr.f32.mxu0 0.0
        %923 = vmatmul.mubr.f32.gmra.mrb[0].mxu0 %v801
        %v924 = vpop.f32.mrb[0].mxu0
        %v925 = vadd.f32 0.0, %v924
        %v926 = vpop.f32.mrb[0].mxu0
        %927 = vmatprep.mubr.f32.mxu0 0.0
        %928 = vmatmul.mubr.f32.gmra.mrb[0].mxu0 %v804
        %v929 = vpop.f32.mrb[0].mxu0
        %v930 = vadd.f32 0.0, %v929
        %v931 = vpop.f32.mrb[0].mxu0
        %932 = vmatprep.mubr.f32.mxu0 0.0
        %933 = vmatmul.mubr.f32.gmra.mrb[0].mxu0 %v807
        %v934 = vpop.f32.mrb[0].mxu0
        %v935 = vadd.f32 0.0, %v934
        %v936 = vpop.f32.mrb[0].mxu0
        %937 = vmatprep.mubr.f32.mxu0 0.0
        %938 = vmatmul.mubr.f32.gmra.mrb[0].mxu0 %v810
        %v939 = vpop.f32.mrb[0].mxu0
        %v940 = vadd.f32 0.0, %v939
        %v941 = vpop.f32.mrb[0].mxu0
        %942 = vmatprep.mubr.f32.mxu0 0.0
        %943 = vmatmul.mubr.f32.gmra.mrb[0].mxu0 %v813
        %v944 = vpop.f32.mrb[0].mxu0
        %v945 = vadd.f32 0.0, %v944
        %v946 = vpop.f32.mrb[0].mxu0
        %947 = vmatprep.mubr.f32.mxu0 0.0
        %948 = vmatmul.mubr.f32.gmra.mrb[0].mxu0 %v816
        %v949 = vpop.f32.mrb[0].mxu0
        %v950 = vadd.f32 0.0, %v949
        %v951 = vpop.f32.mrb[0].mxu0
        %952 = vmatprep.mubr.f32.mxu0 0.0
        %953 = vmatmul.mubr.f32.gmra.mrb[0].mxu0 %v819
        %v954 = vpop.f32.mrb[0].mxu0
        %v955 = vadd.f32 0.0, %v954
        %v956 = vpop.f32.mrb[0].mxu0
        %957 = vmatprep.mubr.f32.mxu0 0.0
        %958 = vmatmul.mubr.f32.gmra.mrb[0].mxu0 %v822
        %v959 = vpop.f32.mrb[0].mxu0
        %v960 = vadd.f32 0.0, %v959
        %v961 = vpop.f32.mrb[0].mxu0
        %962 = vmatprep.mubr.f32.mxu0 0.0
        %963 = vmatmul.mubr.f32.gmra.mrb[0].mxu0 %v825
        %v964 = vpop.f32.mrb[0].mxu0
        %v965 = vadd.f32 0.0, %v964
        %v966 = vpop.f32.mrb[0].mxu0
        %967 = vmatprep.mubr.f32.mxu0 0.0
        %968 = vmatmul.mubr.f32.gmra.mrb[0].mxu0 %v828
        %v969 = vpop.f32.mrb[0].mxu0
        %v970 = vadd.f32 0.0, %v969
        %v971 = vpop.f32.mrb[0].mxu0
        %972 = vmatprep.mubr.f32.mxu0 0.0
        %973 = vmatmul.mubr.f32.gmra.mrb[0].mxu0 %v831
        %v974 = vpop.f32.mrb[0].mxu0
        %v975 = vadd.f32 0.0, %v974
        %v976 = vpop.f32.mrb[0].mxu0
        %977 = vdwg.mxu0
        %979 = vset.pattern.permute.xlu0 0
        %980 = vperm.xlu0 %979, %v199
        %v981 = vpop.permute.xlu0 %980
        %984 = vset.pattern.permute.xlu0 0
        %985 = vperm.xlu0 %984, %v200
        %v986 = vpop.permute.xlu0 %985
        %989 = vset.pattern.permute.xlu0 0
        %990 = vperm.xlu0 %989, %v201
        %v991 = vpop.permute.xlu0 %990
        %994 = vset.pattern.permute.xlu0 0
        %995 = vperm.xlu0 %994, %v202
        %v996 = vpop.permute.xlu0 %995
        %999 = vset.pattern.permute.xlu0 0
        %1000 = vperm.xlu0 %999, %v203
        %v1001 = vpop.permute.xlu0 %1000
        %1004 = vset.pattern.permute.xlu0 0
        %1005 = vperm.xlu0 %1004, %v204
        %v1006 = vpop.permute.xlu0 %1005
        %1009 = vset.pattern.permute.xlu0 0
        %1010 = vperm.xlu0 %1009, %v205
        %v1011 = vpop.permute.xlu0 %1010
        %1014 = vset.pattern.permute.xlu0 0
        %1015 = vperm.xlu0 %1014, %v206
        %v1016 = vpop.permute.xlu0 %1015
        %1019 = vset.pattern.permute.xlu0 0
        %1020 = vperm.xlu0 %1019, %v207
        %v1021 = vpop.permute.xlu0 %1020
        %1024 = vset.pattern.permute.xlu0 0
        %1025 = vperm.xlu0 %1024, %v208
        %v1026 = vpop.permute.xlu0 %1025
        %1029 = vset.pattern.permute.xlu0 0
        %1030 = vperm.xlu0 %1029, %v209
        %v1031 = vpop.permute.xlu0 %1030
        %1034 = vset.pattern.permute.xlu0 0
        %1035 = vperm.xlu0 %1034, %v210
        %v1036 = vpop.permute.xlu0 %1035
        %1039 = vset.pattern.permute.xlu0 0
        %1040 = vperm.xlu0 %1039, %v211
        %v1041 = vpop.permute.xlu0 %1040
        %1044 = vset.pattern.permute.xlu0 0
        %1045 = vperm.xlu0 %1044, %v212
        %v1046 = vpop.permute.xlu0 %1045
        %1049 = vset.pattern.permute.xlu0 0
        %1050 = vperm.xlu0 %1049, %v213
        %v1051 = vpop.permute.xlu0 %1050
        %1054 = vset.pattern.permute.xlu0 0
        %1055 = vperm.xlu0 %1054, %v214
        %v1056 = vpop.permute.xlu0 %1055
        %v1059 = vlaneseq
        %v1060 = vshrl.u32 %v1059, 7
        %v1061 = vsub.s32 0, %v1060
        %v1062 = vrot.slane %v215, %v1061
        %v1064 = vmul.f32 %v981, %v1062
        %v1065 = vmul.f32 %v986, %v1062
        %v1066 = vmul.f32 %v991, %v1062
        %v1067 = vmul.f32 %v996, %v1062
        %v1068 = vmul.f32 %v1001, %v1062
        %v1069 = vmul.f32 %v1006, %v1062
        %v1070 = vmul.f32 %v1011, %v1062
        %v1071 = vmul.f32 %v1016, %v1062
        %v1072 = vmul.f32 %v1021, %v1062
        %v1073 = vmul.f32 %v1026, %v1062
        %v1074 = vmul.f32 %v1031, %v1062
        %v1075 = vmul.f32 %v1036, %v1062
        %v1076 = vmul.f32 %v1041, %v1062
        %v1077 = vmul.f32 %v1046, %v1062
        %v1078 = vmul.f32 %v1051, %v1062
        %v1079 = vmul.f32 %v1056, %v1062
        %v1081 = vlaneseq
        %v1082 = vshrl.u32 %v1081, 7
        %v1083 = vsub.s32 0, %v1082
        %v1084 = vrot.slane %v216, %v1083
        %v1086 = vadd.f32 %v1064, %v1084
        %v1087 = vadd.f32 %v1065, %v1084
        %v1088 = vadd.f32 %v1066, %v1084
        %v1089 = vadd.f32 %v1067, %v1084
        %v1090 = vadd.f32 %v1068, %v1084
        %v1091 = vadd.f32 %v1069, %v1084
        %v1092 = vadd.f32 %v1070, %v1084
        %v1093 = vadd.f32 %v1071, %v1084
        %v1094 = vadd.f32 %v1072, %v1084
        %v1095 = vadd.f32 %v1073, %v1084
        %v1096 = vadd.f32 %v1074, %v1084
        %v1097 = vadd.f32 %v1075, %v1084
        %v1098 = vadd.f32 %v1076, %v1084
        %v1099 = vadd.f32 %v1077, %v1084
        %v1100 = vadd.f32 %v1078, %v1084
        %v1101 = vadd.f32 %v1079, %v1084
        %v1102 = vand.u32 2147483647, %v1086
        %vm1103 = vcmp.le.f32.partialorder %v1102, 0.7853982
        %vm1104 = vcmp.lt.s32.totalorder %v1086, 0
        %v1105 = vand.u32 %v1086, 2139095040
        %v1106 = vshrl.u32 %v1105, 23
        %v1107 = vsub.s32 %v1106, 127
        %v1108 = vand.u32 2147483647, %v1086
        %v1109 = vand.u32 %v1108, 8388607
        %v1110 = vor.u32 %v1109, 8388608
        %v1111 = vsub.s32 0, %v1110
        %v1112 = vadd.s32 %v1107, 1
        %vm1113 = vcmp.gt.s32.totalorder %v1112, 0
        %v1114 = vsel %vm1113, %v1112, 0
        %v1115 = vshrl.u32 %v1114, 5
        %v1116 = vand.u32 %v1114, 31
        %v1117 = vsub.s32 32, %v1116
        %v1118 = vshrl.u32 683565275, %v1117
        %v1119 = vshll.u32 683565275, %v1116
        %v1120 = vshrl.u32 2475754826, %v1117
        %v1121 = vor.u32 %v1119, %v1120
        %v1122 = vshll.u32 2475754826, %v1116
        %v1123 = vshrl.u32 2131351028, %v1117
        %v1124 = vor.u32 %v1122, %v1123
        %v1125 = vshll.u32 2131351028, %v1116
        %v1126 = vshrl.u32 2102212464, %v1117
        %v1127 = vor.u32 %v1125, %v1126
        %v1128 = vshll.u32 2102212464, %v1116
        %v1129 = vshrl.u32 920167782, %v1117
        %v1130 = vor.u32 %v1128, %v1129
        %v1131 = vshll.u32 920167782, %v1116
        %v1132 = vshrl.u32 1326507024, %v1117
        %v1133 = vor.u32 %v1131, %v1132
        %vm1134 = vcmp.lt.s32.totalorder %v1115, 1
        %vm1135 = vcmp.lt.s32.totalorder %v1115, 2
        %vm1136 = vcmp.lt.s32.totalorder %v1115, 3
        %vm1137 = vcmp.lt.s32.totalorder %v1115, 4
        %v1138 = vsel %vm1134, %v1118, %v1121
        %v1139 = vsel %vm1137, %v1127, 2102212464
        %v1140 = vsel %vm1136, %v1124, %v1139
        %v1141 = vsel %vm1135, %v1138, %v1140
        %v1142 = vsel %vm1134, %v1121, %v1124
        %v1143 = vsel %vm1137, %v1130, 920167782
        %v1144 = vsel %vm1136, %v1127, %v1143
        %v1145 = vsel %vm1135, %v1142, %v1144
        %v1146 = vsel %vm1134, %v1124, %v1127
        %v1147 = vsel %vm1137, %v1133, 1326507024
        %v1148 = vsel %vm1136, %v1130, %v1147
        %v1149 = vsel %vm1135, %v1146, %v1148
        %v1150 = vshll.u32 %v1110, 8
        %v1151 = vmul.u32.u64.compose %v1150, %v1149
        %v1152 = vextract.low.u32 %v1151
        %v1153 = vextract.high.u32 %v1151
        %v1154 = vmul.u32.u64.compose %v1150, %v1145
        %v1155 = vextract.low.u32 %v1154
        %v1156 = vextract.high.u32 %v1154
        %v1157 = vmul.u32 %v1150, %v1141
        %v1158 = vadd.s32 %v1153, %v1155
        %vm1159 = vc.u32 %v1153, %v1155
        %v1160 = vadd.s32 %v1156, 1
        %v1161 = vsel %vm1159, %v1160, %v1156
        %v1162 = vadd.s32 %v1157, %v1161
        %v1163 = vadd.s32 %v1162, 536870912
        %v1164 = vshrl.u32 %v1163, 30
        %v1165 = vshll.u32 %v1164, 30
        %v1166 = vsub.s32 %v1162, %v1165
        %vm1167 = vcmp.lt.s32.totalorder %v1166, 0
        %v1168 = vsub.s32 0, %v1166
        %v1169 = vsel %vm1167, %v1168, %v1166
        %v1170 = vclz %v1169
        %v1171 = vsub.s32 %v1170, 2
        %vm1172 = vcmp.gt.s32.totalorder 0, %v1171
        %v1173 = vsel %vm1172, 0, %v1171
        %v1174 = vsub.s32 32, %v1173
        %v1175 = vshll.u32 %v1166, %v1173
        %v1176 = vshrl.u32 %v1158, %v1174
        %v1177 = vor.u32 %v1175, %v1176
        %v1178 = vsub.s32 4294967266, %v1173
        %v1179 = vadd.s32 %v1178, 127
        %v1180 = vshll.u32 %v1179, 23
        %v1181 = vor.u32 4788187, %v1180
        %v1182 = vand.u32 2147483647, %v1181
        %v1184 = vcvt.s32.f32 %v1177
        %v1185 = vmul.f32 %v1184, %v1182
        %v1186 = vxor.u32 %v1185, 2147483648
        %v1187 = vsel %vm1104, %v1186, %v1185
        %v1188 = vsub.s32 4, %v1164
        %v1189 = vsel %vm1104, %v1188, %v1164
        %v1190 = vsel %vm1103, %v1086, %v1187
        %v1191 = vsel %vm1103, 0, %v1189
        %v1192 = vcosq.f32.pop %v1190
        %v1193 = vsinq.f32.pop %v1190
        %vm1194 = vweird.f32 %v1086
        %v1195 = vadd.s32 %v1191, 3
        %v1196 = vand.u32 %v1195, 3
        %vm1197 = vcmp.lt.s32.totalorder %v1196, 2
        %vm1198 = vcmp.eq.s32.totalorder %v1196, 0
        %v1199 = vxor.u32 %v1193, 2147483648
        %v1200 = vsel %vm1198, %v1192, %v1199
        %vm1201 = vcmp.eq.s32.totalorder %v1196, 2
        %v1202 = vxor.u32 %v1192, 2147483648
        %v1203 = vsel %vm1201, %v1202, %v1193
        %v1204 = vsel %vm1197, %v1200, %v1203
        %v1205 = vsel %vm1194, nan, %v1204
        %v1206 = vand.u32 2147483647, %v1087
        %vm1207 = vcmp.le.f32.partialorder %v1206, 0.7853982
        %vm1208 = vcmp.lt.s32.totalorder %v1087, 0
        %v1209 = vand.u32 %v1087, 2139095040
        %v1210 = vshrl.u32 %v1209, 23
        %v1211 = vsub.s32 %v1210, 127
        %v1212 = vand.u32 2147483647, %v1087
        %v1213 = vand.u32 %v1212, 8388607
        %v1214 = vor.u32 %v1213, 8388608
        %v1215 = vsub.s32 0, %v1214
        %v1216 = vadd.s32 %v1211, 1
        %vm1217 = vcmp.gt.s32.totalorder %v1216, 0
        %v1218 = vsel %vm1217, %v1216, 0
        %v1219 = vshrl.u32 %v1218, 5
        %v1220 = vand.u32 %v1218, 31
        %v1221 = vsub.s32 32, %v1220
        %v1222 = vshrl.u32 683565275, %v1221
        %v1223 = vshll.u32 683565275, %v1220
        %v1224 = vshrl.u32 2475754826, %v1221
        %v1225 = vor.u32 %v1223, %v1224
        %v1226 = vshll.u32 2475754826, %v1220
        %v1227 = vshrl.u32 2131351028, %v1221
        %v1228 = vor.u32 %v1226, %v1227
        %v1229 = vshll.u32 2131351028, %v1220
        %v1230 = vshrl.u32 2102212464, %v1221
        %v1231 = vor.u32 %v1229, %v1230
        %v1232 = vshll.u32 2102212464, %v1220
        %v1233 = vshrl.u32 920167782, %v1221
        %v1234 = vor.u32 %v1232, %v1233
        %v1235 = vshll.u32 920167782, %v1220
        %v1236 = vshrl.u32 1326507024, %v1221
        %v1237 = vor.u32 %v1235, %v1236
        %vm1238 = vcmp.lt.s32.totalorder %v1219, 1
        %vm1239 = vcmp.lt.s32.totalorder %v1219, 2
        %vm1240 = vcmp.lt.s32.totalorder %v1219, 3
        %vm1241 = vcmp.lt.s32.totalorder %v1219, 4
        %v1242 = vsel %vm1238, %v1222, %v1225
        %v1243 = vsel %vm1241, %v1231, 2102212464
        %v1244 = vsel %vm1240, %v1228, %v1243
        %v1245 = vsel %vm1239, %v1242, %v1244
        %v1246 = vsel %vm1238, %v1225, %v1228
        %v1247 = vsel %vm1241, %v1234, 920167782
        %v1248 = vsel %vm1240, %v1231, %v1247
        %v1249 = vsel %vm1239, %v1246, %v1248
        %v1250 = vsel %vm1238, %v1228, %v1231
        %v1251 = vsel %vm1241, %v1237, 1326507024
        %v1252 = vsel %vm1240, %v1234, %v1251
        %v1253 = vsel %vm1239, %v1250, %v1252
        %v1254 = vshll.u32 %v1214, 8
        %v1255 = vmul.u32.u64.compose %v1254, %v1253
        %v1256 = vextract.low.u32 %v1255
        %v1257 = vextract.high.u32 %v1255
        %v1258 = vmul.u32.u64.compose %v1254, %v1249
        %v1259 = vextract.low.u32 %v1258
        %v1260 = vextract.high.u32 %v1258
        %v1261 = vmul.u32 %v1254, %v1245
        %v1262 = vadd.s32 %v1257, %v1259
        %vm1263 = vc.u32 %v1257, %v1259
        %v1264 = vadd.s32 %v1260, 1
        %v1265 = vsel %vm1263, %v1264, %v1260
        %v1266 = vadd.s32 %v1261, %v1265
        %v1267 = vadd.s32 %v1266, 536870912
        %v1268 = vshrl.u32 %v1267, 30
        %v1269 = vshll.u32 %v1268, 30
        %v1270 = vsub.s32 %v1266, %v1269
        %vm1271 = vcmp.lt.s32.totalorder %v1270, 0
        %v1272 = vsub.s32 0, %v1270
        %v1273 = vsel %vm1271, %v1272, %v1270
        %v1274 = vclz %v1273
        %v1275 = vsub.s32 %v1274, 2
        %vm1276 = vcmp.gt.s32.totalorder 0, %v1275
        %v1277 = vsel %vm1276, 0, %v1275
        %v1278 = vsub.s32 32, %v1277
        %v1279 = vshll.u32 %v1270, %v1277
        %v1280 = vshrl.u32 %v1262, %v1278
        %v1281 = vor.u32 %v1279, %v1280
        %v1282 = vsub.s32 4294967266, %v1277
        %v1283 = vadd.s32 %v1282, 127
        %v1284 = vshll.u32 %v1283, 23
        %v1285 = vor.u32 4788187, %v1284
        %v1286 = vand.u32 2147483647, %v1285
        %v1288 = vcvt.s32.f32 %v1281
        %v1289 = vmul.f32 %v1288, %v1286
        %v1290 = vxor.u32 %v1289, 2147483648
        %v1291 = vsel %vm1208, %v1290, %v1289
        %v1292 = vsub.s32 4, %v1268
        %v1293 = vsel %vm1208, %v1292, %v1268
        %v1294 = vsel %vm1207, %v1087, %v1291
        %v1295 = vsel %vm1207, 0, %v1293
        %v1296 = vcosq.f32.pop %v1294
        %v1297 = vsinq.f32.pop %v1294
        %vm1298 = vweird.f32 %v1087
        %v1299 = vadd.s32 %v1295, 3
        %v1300 = vand.u32 %v1299, 3
        %vm1301 = vcmp.lt.s32.totalorder %v1300, 2
        %vm1302 = vcmp.eq.s32.totalorder %v1300, 0
        %v1303 = vxor.u32 %v1297, 2147483648
        %v1304 = vsel %vm1302, %v1296, %v1303
        %vm1305 = vcmp.eq.s32.totalorder %v1300, 2
        %v1306 = vxor.u32 %v1296, 2147483648
        %v1307 = vsel %vm1305, %v1306, %v1297
        %v1308 = vsel %vm1301, %v1304, %v1307
        %v1309 = vsel %vm1298, nan, %v1308
        %v1310 = vand.u32 2147483647, %v1088
        %vm1311 = vcmp.le.f32.partialorder %v1310, 0.7853982
        %vm1312 = vcmp.lt.s32.totalorder %v1088, 0
        %v1313 = vand.u32 %v1088, 2139095040
        %v1314 = vshrl.u32 %v1313, 23
        %v1315 = vsub.s32 %v1314, 127
        %v1316 = vand.u32 2147483647, %v1088
        %v1317 = vand.u32 %v1316, 8388607
        %v1318 = vor.u32 %v1317, 8388608
        %v1319 = vsub.s32 0, %v1318
        %v1320 = vadd.s32 %v1315, 1
        %vm1321 = vcmp.gt.s32.totalorder %v1320, 0
        %v1322 = vsel %vm1321, %v1320, 0
        %v1323 = vshrl.u32 %v1322, 5
        %v1324 = vand.u32 %v1322, 31
        %v1325 = vsub.s32 32, %v1324
        %v1326 = vshrl.u32 683565275, %v1325
        %v1327 = vshll.u32 683565275, %v1324
        %v1328 = vshrl.u32 2475754826, %v1325
        %v1329 = vor.u32 %v1327, %v1328
        %v1330 = vshll.u32 2475754826, %v1324
        %v1331 = vshrl.u32 2131351028, %v1325
        %v1332 = vor.u32 %v1330, %v1331
        %v1333 = vshll.u32 2131351028, %v1324
        %v1334 = vshrl.u32 2102212464, %v1325
        %v1335 = vor.u32 %v1333, %v1334
        %v1336 = vshll.u32 2102212464, %v1324
        %v1337 = vshrl.u32 920167782, %v1325
        %v1338 = vor.u32 %v1336, %v1337
        %v1339 = vshll.u32 920167782, %v1324
        %v1340 = vshrl.u32 1326507024, %v1325
        %v1341 = vor.u32 %v1339, %v1340
        %vm1342 = vcmp.lt.s32.totalorder %v1323, 1
        %vm1343 = vcmp.lt.s32.totalorder %v1323, 2
        %vm1344 = vcmp.lt.s32.totalorder %v1323, 3
        %vm1345 = vcmp.lt.s32.totalorder %v1323, 4
        %v1346 = vsel %vm1342, %v1326, %v1329
        %v1347 = vsel %vm1345, %v1335, 2102212464
        %v1348 = vsel %vm1344, %v1332, %v1347
        %v1349 = vsel %vm1343, %v1346, %v1348
        %v1350 = vsel %vm1342, %v1329, %v1332
        %v1351 = vsel %vm1345, %v1338, 920167782
        %v1352 = vsel %vm1344, %v1335, %v1351
        %v1353 = vsel %vm1343, %v1350, %v1352
        %v1354 = vsel %vm1342, %v1332, %v1335
        %v1355 = vsel %vm1345, %v1341, 1326507024
        %v1356 = vsel %vm1344, %v1338, %v1355
        %v1357 = vsel %vm1343, %v1354, %v1356
        %v1358 = vshll.u32 %v1318, 8
        %v1359 = vmul.u32.u64.compose %v1358, %v1357
        %v1360 = vextract.low.u32 %v1359
        %v1361 = vextract.high.u32 %v1359
        %v1362 = vmul.u32.u64.compose %v1358, %v1353
        %v1363 = vextract.low.u32 %v1362
        %v1364 = vextract.high.u32 %v1362
        %v1365 = vmul.u32 %v1358, %v1349
        %v1366 = vadd.s32 %v1361, %v1363
        %vm1367 = vc.u32 %v1361, %v1363
        %v1368 = vadd.s32 %v1364, 1
        %v1369 = vsel %vm1367, %v1368, %v1364
        %v1370 = vadd.s32 %v1365, %v1369
        %v1371 = vadd.s32 %v1370, 536870912
        %v1372 = vshrl.u32 %v1371, 30
        %v1373 = vshll.u32 %v1372, 30
        %v1374 = vsub.s32 %v1370, %v1373
        %vm1375 = vcmp.lt.s32.totalorder %v1374, 0
        %v1376 = vsub.s32 0, %v1374
        %v1377 = vsel %vm1375, %v1376, %v1374
        %v1378 = vclz %v1377
        %v1379 = vsub.s32 %v1378, 2
        %vm1380 = vcmp.gt.s32.totalorder 0, %v1379
        %v1381 = vsel %vm1380, 0, %v1379
        %v1382 = vsub.s32 32, %v1381
        %v1383 = vshll.u32 %v1374, %v1381
        %v1384 = vshrl.u32 %v1366, %v1382
        %v1385 = vor.u32 %v1383, %v1384
        %v1386 = vsub.s32 4294967266, %v1381
        %v1387 = vadd.s32 %v1386, 127
        %v1388 = vshll.u32 %v1387, 23
        %v1389 = vor.u32 4788187, %v1388
        %v1390 = vand.u32 2147483647, %v1389
        %v1392 = vcvt.s32.f32 %v1385
        %v1393 = vmul.f32 %v1392, %v1390
        %v1394 = vxor.u32 %v1393, 2147483648
        %v1395 = vsel %vm1312, %v1394, %v1393
        %v1396 = vsub.s32 4, %v1372
        %v1397 = vsel %vm1312, %v1396, %v1372
        %v1398 = vsel %vm1311, %v1088, %v1395
        %v1399 = vsel %vm1311, 0, %v1397
        %v1400 = vcosq.f32.pop %v1398
        %v1401 = vsinq.f32.pop %v1398
        %vm1402 = vweird.f32 %v1088
        %v1403 = vadd.s32 %v1399, 3
        %v1404 = vand.u32 %v1403, 3
        %vm1405 = vcmp.lt.s32.totalorder %v1404, 2
        %vm1406 = vcmp.eq.s32.totalorder %v1404, 0
        %v1407 = vxor.u32 %v1401, 2147483648
        %v1408 = vsel %vm1406, %v1400, %v1407
        %vm1409 = vcmp.eq.s32.totalorder %v1404, 2
        %v1410 = vxor.u32 %v1400, 2147483648
        %v1411 = vsel %vm1409, %v1410, %v1401
        %v1412 = vsel %vm1405, %v1408, %v1411
        %v1413 = vsel %vm1402, nan, %v1412
        %v1414 = vand.u32 2147483647, %v1089
        %vm1415 = vcmp.le.f32.partialorder %v1414, 0.7853982
        %vm1416 = vcmp.lt.s32.totalorder %v1089, 0
        %v1417 = vand.u32 %v1089, 2139095040
        %v1418 = vshrl.u32 %v1417, 23
        %v1419 = vsub.s32 %v1418, 127
        %v1420 = vand.u32 2147483647, %v1089
        %v1421 = vand.u32 %v1420, 8388607
        %v1422 = vor.u32 %v1421, 8388608
        %v1423 = vsub.s32 0, %v1422
        %v1424 = vadd.s32 %v1419, 1
        %vm1425 = vcmp.gt.s32.totalorder %v1424, 0
        %v1426 = vsel %vm1425, %v1424, 0
        %v1427 = vshrl.u32 %v1426, 5
        %v1428 = vand.u32 %v1426, 31
        %v1429 = vsub.s32 32, %v1428
        %v1430 = vshrl.u32 683565275, %v1429
        %v1431 = vshll.u32 683565275, %v1428
        %v1432 = vshrl.u32 2475754826, %v1429
        %v1433 = vor.u32 %v1431, %v1432
        %v1434 = vshll.u32 2475754826, %v1428
        %v1435 = vshrl.u32 2131351028, %v1429
        %v1436 = vor.u32 %v1434, %v1435
        %v1437 = vshll.u32 2131351028, %v1428
        %v1438 = vshrl.u32 2102212464, %v1429
        %v1439 = vor.u32 %v1437, %v1438
        %v1440 = vshll.u32 2102212464, %v1428
        %v1441 = vshrl.u32 920167782, %v1429
        %v1442 = vor.u32 %v1440, %v1441
        %v1443 = vshll.u32 920167782, %v1428
        %v1444 = vshrl.u32 1326507024, %v1429
        %v1445 = vor.u32 %v1443, %v1444
        %vm1446 = vcmp.lt.s32.totalorder %v1427, 1
        %vm1447 = vcmp.lt.s32.totalorder %v1427, 2
        %vm1448 = vcmp.lt.s32.totalorder %v1427, 3
        %vm1449 = vcmp.lt.s32.totalorder %v1427, 4
        %v1450 = vsel %vm1446, %v1430, %v1433
        %v1451 = vsel %vm1449, %v1439, 2102212464
        %v1452 = vsel %vm1448, %v1436, %v1451
        %v1453 = vsel %vm1447, %v1450, %v1452
        %v1454 = vsel %vm1446, %v1433, %v1436
        %v1455 = vsel %vm1449, %v1442, 920167782
        %v1456 = vsel %vm1448, %v1439, %v1455
        %v1457 = vsel %vm1447, %v1454, %v1456
        %v1458 = vsel %vm1446, %v1436, %v1439
        %v1459 = vsel %vm1449, %v1445, 1326507024
        %v1460 = vsel %vm1448, %v1442, %v1459
        %v1461 = vsel %vm1447, %v1458, %v1460
        %v1462 = vshll.u32 %v1422, 8
        %v1463 = vmul.u32.u64.compose %v1462, %v1461
        %v1464 = vextract.low.u32 %v1463
        %v1465 = vextract.high.u32 %v1463
        %v1466 = vmul.u32.u64.compose %v1462, %v1457
        %v1467 = vextract.low.u32 %v1466
        %v1468 = vextract.high.u32 %v1466
        %v1469 = vmul.u32 %v1462, %v1453
        %v1470 = vadd.s32 %v1465, %v1467
        %vm1471 = vc.u32 %v1465, %v1467
        %v1472 = vadd.s32 %v1468, 1
        %v1473 = vsel %vm1471, %v1472, %v1468
        %v1474 = vadd.s32 %v1469, %v1473
        %v1475 = vadd.s32 %v1474, 536870912
        %v1476 = vshrl.u32 %v1475, 30
        %v1477 = vshll.u32 %v1476, 30
        %v1478 = vsub.s32 %v1474, %v1477
        %vm1479 = vcmp.lt.s32.totalorder %v1478, 0
        %v1480 = vsub.s32 0, %v1478
        %v1481 = vsel %vm1479, %v1480, %v1478
        %v1482 = vclz %v1481
        %v1483 = vsub.s32 %v1482, 2
        %vm1484 = vcmp.gt.s32.totalorder 0, %v1483
        %v1485 = vsel %vm1484, 0, %v1483
        %v1486 = vsub.s32 32, %v1485
        %v1487 = vshll.u32 %v1478, %v1485
        %v1488 = vshrl.u32 %v1470, %v1486
        %v1489 = vor.u32 %v1487, %v1488
        %v1490 = vsub.s32 4294967266, %v1485
        %v1491 = vadd.s32 %v1490, 127
        %v1492 = vshll.u32 %v1491, 23
        %v1493 = vor.u32 4788187, %v1492
        %v1494 = vand.u32 2147483647, %v1493
        %v1496 = vcvt.s32.f32 %v1489
        %v1497 = vmul.f32 %v1496, %v1494
        %v1498 = vxor.u32 %v1497, 2147483648
        %v1499 = vsel %vm1416, %v1498, %v1497
        %v1500 = vsub.s32 4, %v1476
        %v1501 = vsel %vm1416, %v1500, %v1476
        %v1502 = vsel %vm1415, %v1089, %v1499
        %v1503 = vsel %vm1415, 0, %v1501
        %v1504 = vcosq.f32.pop %v1502
        %v1505 = vsinq.f32.pop %v1502
        %vm1506 = vweird.f32 %v1089
        %v1507 = vadd.s32 %v1503, 3
        %v1508 = vand.u32 %v1507, 3
        %vm1509 = vcmp.lt.s32.totalorder %v1508, 2
        %vm1510 = vcmp.eq.s32.totalorder %v1508, 0
        %v1511 = vxor.u32 %v1505, 2147483648
        %v1512 = vsel %vm1510, %v1504, %v1511
        %vm1513 = vcmp.eq.s32.totalorder %v1508, 2
        %v1514 = vxor.u32 %v1504, 2147483648
        %v1515 = vsel %vm1513, %v1514, %v1505
        %v1516 = vsel %vm1509, %v1512, %v1515
        %v1517 = vsel %vm1506, nan, %v1516
        %v1518 = vand.u32 2147483647, %v1090
        %vm1519 = vcmp.le.f32.partialorder %v1518, 0.7853982
        %vm1520 = vcmp.lt.s32.totalorder %v1090, 0
        %v1521 = vand.u32 %v1090, 2139095040
        %v1522 = vshrl.u32 %v1521, 23
        %v1523 = vsub.s32 %v1522, 127
        %v1524 = vand.u32 2147483647, %v1090
        %v1525 = vand.u32 %v1524, 8388607
        %v1526 = vor.u32 %v1525, 8388608
        %v1527 = vsub.s32 0, %v1526
        %v1528 = vadd.s32 %v1523, 1
        %vm1529 = vcmp.gt.s32.totalorder %v1528, 0
        %v1530 = vsel %vm1529, %v1528, 0
        %v1531 = vshrl.u32 %v1530, 5
        %v1532 = vand.u32 %v1530, 31
        %v1533 = vsub.s32 32, %v1532
        %v1534 = vshrl.u32 683565275, %v1533
        %v1535 = vshll.u32 683565275, %v1532
        %v1536 = vshrl.u32 2475754826, %v1533
        %v1537 = vor.u32 %v1535, %v1536
        %v1538 = vshll.u32 2475754826, %v1532
        %v1539 = vshrl.u32 2131351028, %v1533
        %v1540 = vor.u32 %v1538, %v1539
        %v1541 = vshll.u32 2131351028, %v1532
        %v1542 = vshrl.u32 2102212464, %v1533
        %v1543 = vor.u32 %v1541, %v1542
        %v1544 = vshll.u32 2102212464, %v1532
        %v1545 = vshrl.u32 920167782, %v1533
        %v1546 = vor.u32 %v1544, %v1545
        %v1547 = vshll.u32 920167782, %v1532
        %v1548 = vshrl.u32 1326507024, %v1533
        %v1549 = vor.u32 %v1547, %v1548
        %vm1550 = vcmp.lt.s32.totalorder %v1531, 1
        %vm1551 = vcmp.lt.s32.totalorder %v1531, 2
        %vm1552 = vcmp.lt.s32.totalorder %v1531, 3
        %vm1553 = vcmp.lt.s32.totalorder %v1531, 4
        %v1554 = vsel %vm1550, %v1534, %v1537
        %v1555 = vsel %vm1553, %v1543, 2102212464
        %v1556 = vsel %vm1552, %v1540, %v1555
        %v1557 = vsel %vm1551, %v1554, %v1556
        %v1558 = vsel %vm1550, %v1537, %v1540
        %v1559 = vsel %vm1553, %v1546, 920167782
        %v1560 = vsel %vm1552, %v1543, %v1559
        %v1561 = vsel %vm1551, %v1558, %v1560
        %v1562 = vsel %vm1550, %v1540, %v1543
        %v1563 = vsel %vm1553, %v1549, 1326507024
        %v1564 = vsel %vm1552, %v1546, %v1563
        %v1565 = vsel %vm1551, %v1562, %v1564
        %v1566 = vshll.u32 %v1526, 8
        %v1567 = vmul.u32.u64.compose %v1566, %v1565
        %v1568 = vextract.low.u32 %v1567
        %v1569 = vextract.high.u32 %v1567
        %v1570 = vmul.u32.u64.compose %v1566, %v1561
        %v1571 = vextract.low.u32 %v1570
        %v1572 = vextract.high.u32 %v1570
        %v1573 = vmul.u32 %v1566, %v1557
        %v1574 = vadd.s32 %v1569, %v1571
        %vm1575 = vc.u32 %v1569, %v1571
        %v1576 = vadd.s32 %v1572, 1
        %v1577 = vsel %vm1575, %v1576, %v1572
        %v1578 = vadd.s32 %v1573, %v1577
        %v1579 = vadd.s32 %v1578, 536870912
        %v1580 = vshrl.u32 %v1579, 30
        %v1581 = vshll.u32 %v1580, 30
        %v1582 = vsub.s32 %v1578, %v1581
        %vm1583 = vcmp.lt.s32.totalorder %v1582, 0
        %v1584 = vsub.s32 0, %v1582
        %v1585 = vsel %vm1583, %v1584, %v1582
        %v1586 = vclz %v1585
        %v1587 = vsub.s32 %v1586, 2
        %vm1588 = vcmp.gt.s32.totalorder 0, %v1587
        %v1589 = vsel %vm1588, 0, %v1587
        %v1590 = vsub.s32 32, %v1589
        %v1591 = vshll.u32 %v1582, %v1589
        %v1592 = vshrl.u32 %v1574, %v1590
        %v1593 = vor.u32 %v1591, %v1592
        %v1594 = vsub.s32 4294967266, %v1589
        %v1595 = vadd.s32 %v1594, 127
        %v1596 = vshll.u32 %v1595, 23
        %v1597 = vor.u32 4788187, %v1596
        %v1598 = vand.u32 2147483647, %v1597
        %v1600 = vcvt.s32.f32 %v1593
        %v1601 = vmul.f32 %v1600, %v1598
        %v1602 = vxor.u32 %v1601, 2147483648
        %v1603 = vsel %vm1520, %v1602, %v1601
        %v1604 = vsub.s32 4, %v1580
        %v1605 = vsel %vm1520, %v1604, %v1580
        %v1606 = vsel %vm1519, %v1090, %v1603
        %v1607 = vsel %vm1519, 0, %v1605
        %v1608 = vcosq.f32.pop %v1606
        %v1609 = vsinq.f32.pop %v1606
        %vm1610 = vweird.f32 %v1090
        %v1611 = vadd.s32 %v1607, 3
        %v1612 = vand.u32 %v1611, 3
        %vm1613 = vcmp.lt.s32.totalorder %v1612, 2
        %vm1614 = vcmp.eq.s32.totalorder %v1612, 0
        %v1615 = vxor.u32 %v1609, 2147483648
        %v1616 = vsel %vm1614, %v1608, %v1615
        %vm1617 = vcmp.eq.s32.totalorder %v1612, 2
        %v1618 = vxor.u32 %v1608, 2147483648
        %v1619 = vsel %vm1617, %v1618, %v1609
        %v1620 = vsel %vm1613, %v1616, %v1619
        %v1621 = vsel %vm1610, nan, %v1620
        %v1622 = vand.u32 2147483647, %v1091
        %vm1623 = vcmp.le.f32.partialorder %v1622, 0.7853982
        %vm1624 = vcmp.lt.s32.totalorder %v1091, 0
        %v1625 = vand.u32 %v1091, 2139095040
        %v1626 = vshrl.u32 %v1625, 23
        %v1627 = vsub.s32 %v1626, 127
        %v1628 = vand.u32 2147483647, %v1091
        %v1629 = vand.u32 %v1628, 8388607
        %v1630 = vor.u32 %v1629, 8388608
        %v1631 = vsub.s32 0, %v1630
        %v1632 = vadd.s32 %v1627, 1
        %vm1633 = vcmp.gt.s32.totalorder %v1632, 0
        %v1634 = vsel %vm1633, %v1632, 0
        %v1635 = vshrl.u32 %v1634, 5
        %v1636 = vand.u32 %v1634, 31
        %v1637 = vsub.s32 32, %v1636
        %v1638 = vshrl.u32 683565275, %v1637
        %v1639 = vshll.u32 683565275, %v1636
        %v1640 = vshrl.u32 2475754826, %v1637
        %v1641 = vor.u32 %v1639, %v1640
        %v1642 = vshll.u32 2475754826, %v1636
        %v1643 = vshrl.u32 2131351028, %v1637
        %v1644 = vor.u32 %v1642, %v1643
        %v1645 = vshll.u32 2131351028, %v1636
        %v1646 = vshrl.u32 2102212464, %v1637
        %v1647 = vor.u32 %v1645, %v1646
        %v1648 = vshll.u32 2102212464, %v1636
        %v1649 = vshrl.u32 920167782, %v1637
        %v1650 = vor.u32 %v1648, %v1649
        %v1651 = vshll.u32 920167782, %v1636
        %v1652 = vshrl.u32 1326507024, %v1637
        %v1653 = vor.u32 %v1651, %v1652
        %vm1654 = vcmp.lt.s32.totalorder %v1635, 1
        %vm1655 = vcmp.lt.s32.totalorder %v1635, 2
        %vm1656 = vcmp.lt.s32.totalorder %v1635, 3
        %vm1657 = vcmp.lt.s32.totalorder %v1635, 4
        %v1658 = vsel %vm1654, %v1638, %v1641
        %v1659 = vsel %vm1657, %v1647, 2102212464
        %v1660 = vsel %vm1656, %v1644, %v1659
        %v1661 = vsel %vm1655, %v1658, %v1660
        %v1662 = vsel %vm1654, %v1641, %v1644
        %v1663 = vsel %vm1657, %v1650, 920167782
        %v1664 = vsel %vm1656, %v1647, %v1663
        %v1665 = vsel %vm1655, %v1662, %v1664
        %v1666 = vsel %vm1654, %v1644, %v1647
        %v1667 = vsel %vm1657, %v1653, 1326507024
        %v1668 = vsel %vm1656, %v1650, %v1667
        %v1669 = vsel %vm1655, %v1666, %v1668
        %v1670 = vshll.u32 %v1630, 8
        %v1671 = vmul.u32.u64.compose %v1670, %v1669
        %v1672 = vextract.low.u32 %v1671
        %v1673 = vextract.high.u32 %v1671
        %v1674 = vmul.u32.u64.compose %v1670, %v1665
        %v1675 = vextract.low.u32 %v1674
        %v1676 = vextract.high.u32 %v1674
        %v1677 = vmul.u32 %v1670, %v1661
        %v1678 = vadd.s32 %v1673, %v1675
        %vm1679 = vc.u32 %v1673, %v1675
        %v1680 = vadd.s32 %v1676, 1
        %v1681 = vsel %vm1679, %v1680, %v1676
        %v1682 = vadd.s32 %v1677, %v1681
        %v1683 = vadd.s32 %v1682, 536870912
        %v1684 = vshrl.u32 %v1683, 30
        %v1685 = vshll.u32 %v1684, 30
        %v1686 = vsub.s32 %v1682, %v1685
        %vm1687 = vcmp.lt.s32.totalorder %v1686, 0
        %v1688 = vsub.s32 0, %v1686
        %v1689 = vsel %vm1687, %v1688, %v1686
        %v1690 = vclz %v1689
        %v1691 = vsub.s32 %v1690, 2
        %vm1692 = vcmp.gt.s32.totalorder 0, %v1691
        %v1693 = vsel %vm1692, 0, %v1691
        %v1694 = vsub.s32 32, %v1693
        %v1695 = vshll.u32 %v1686, %v1693
        %v1696 = vshrl.u32 %v1678, %v1694
        %v1697 = vor.u32 %v1695, %v1696
        %v1698 = vsub.s32 4294967266, %v1693
        %v1699 = vadd.s32 %v1698, 127
        %v1700 = vshll.u32 %v1699, 23
        %v1701 = vor.u32 4788187, %v1700
        %v1702 = vand.u32 2147483647, %v1701
        %v1704 = vcvt.s32.f32 %v1697
        %v1705 = vmul.f32 %v1704, %v1702
        %v1706 = vxor.u32 %v1705, 2147483648
        %v1707 = vsel %vm1624, %v1706, %v1705
        %v1708 = vsub.s32 4, %v1684
        %v1709 = vsel %vm1624, %v1708, %v1684
        %v1710 = vsel %vm1623, %v1091, %v1707
        %v1711 = vsel %vm1623, 0, %v1709
        %v1712 = vcosq.f32.pop %v1710
        %v1713 = vsinq.f32.pop %v1710
        %vm1714 = vweird.f32 %v1091
        %v1715 = vadd.s32 %v1711, 3
        %v1716 = vand.u32 %v1715, 3
        %vm1717 = vcmp.lt.s32.totalorder %v1716, 2
        %vm1718 = vcmp.eq.s32.totalorder %v1716, 0
        %v1719 = vxor.u32 %v1713, 2147483648
        %v1720 = vsel %vm1718, %v1712, %v1719
        %vm1721 = vcmp.eq.s32.totalorder %v1716, 2
        %v1722 = vxor.u32 %v1712, 2147483648
        %v1723 = vsel %vm1721, %v1722, %v1713
        %v1724 = vsel %vm1717, %v1720, %v1723
        %v1725 = vsel %vm1714, nan, %v1724
        %v1726 = vand.u32 2147483647, %v1092
        %vm1727 = vcmp.le.f32.partialorder %v1726, 0.7853982
        %vm1728 = vcmp.lt.s32.totalorder %v1092, 0
        %v1729 = vand.u32 %v1092, 2139095040
        %v1730 = vshrl.u32 %v1729, 23
        %v1731 = vsub.s32 %v1730, 127
        %v1732 = vand.u32 2147483647, %v1092
        %v1733 = vand.u32 %v1732, 8388607
        %v1734 = vor.u32 %v1733, 8388608
        %v1735 = vsub.s32 0, %v1734
        %v1736 = vadd.s32 %v1731, 1
        %vm1737 = vcmp.gt.s32.totalorder %v1736, 0
        %v1738 = vsel %vm1737, %v1736, 0
        %v1739 = vshrl.u32 %v1738, 5
        %v1740 = vand.u32 %v1738, 31
        %v1741 = vsub.s32 32, %v1740
        %v1742 = vshrl.u32 683565275, %v1741
        %v1743 = vshll.u32 683565275, %v1740
        %v1744 = vshrl.u32 2475754826, %v1741
        %v1745 = vor.u32 %v1743, %v1744
        %v1746 = vshll.u32 2475754826, %v1740
        %v1747 = vshrl.u32 2131351028, %v1741
        %v1748 = vor.u32 %v1746, %v1747
        %v1749 = vshll.u32 2131351028, %v1740
        %v1750 = vshrl.u32 2102212464, %v1741
        %v1751 = vor.u32 %v1749, %v1750
        %v1752 = vshll.u32 2102212464, %v1740
        %v1753 = vshrl.u32 920167782, %v1741
        %v1754 = vor.u32 %v1752, %v1753
        %v1755 = vshll.u32 920167782, %v1740
        %v1756 = vshrl.u32 1326507024, %v1741
        %v1757 = vor.u32 %v1755, %v1756
        %vm1758 = vcmp.lt.s32.totalorder %v1739, 1
        %vm1759 = vcmp.lt.s32.totalorder %v1739, 2
        %vm1760 = vcmp.lt.s32.totalorder %v1739, 3
        %vm1761 = vcmp.lt.s32.totalorder %v1739, 4
        %v1762 = vsel %vm1758, %v1742, %v1745
        %v1763 = vsel %vm1761, %v1751, 2102212464
        %v1764 = vsel %vm1760, %v1748, %v1763
        %v1765 = vsel %vm1759, %v1762, %v1764
        %v1766 = vsel %vm1758, %v1745, %v1748
        %v1767 = vsel %vm1761, %v1754, 920167782
        %v1768 = vsel %vm1760, %v1751, %v1767
        %v1769 = vsel %vm1759, %v1766, %v1768
        %v1770 = vsel %vm1758, %v1748, %v1751
        %v1771 = vsel %vm1761, %v1757, 1326507024
        %v1772 = vsel %vm1760, %v1754, %v1771
        %v1773 = vsel %vm1759, %v1770, %v1772
        %v1774 = vshll.u32 %v1734, 8
        %v1775 = vmul.u32.u64.compose %v1774, %v1773
        %v1776 = vextract.low.u32 %v1775
        %v1777 = vextract.high.u32 %v1775
        %v1778 = vmul.u32.u64.compose %v1774, %v1769
        %v1779 = vextract.low.u32 %v1778
        %v1780 = vextract.high.u32 %v1778
        %v1781 = vmul.u32 %v1774, %v1765
        %v1782 = vadd.s32 %v1777, %v1779
        %vm1783 = vc.u32 %v1777, %v1779
        %v1784 = vadd.s32 %v1780, 1
        %v1785 = vsel %vm1783, %v1784, %v1780
        %v1786 = vadd.s32 %v1781, %v1785
        %v1787 = vadd.s32 %v1786, 536870912
        %v1788 = vshrl.u32 %v1787, 30
        %v1789 = vshll.u32 %v1788, 30
        %v1790 = vsub.s32 %v1786, %v1789
        %vm1791 = vcmp.lt.s32.totalorder %v1790, 0
        %v1792 = vsub.s32 0, %v1790
        %v1793 = vsel %vm1791, %v1792, %v1790
        %v1794 = vclz %v1793
        %v1795 = vsub.s32 %v1794, 2
        %vm1796 = vcmp.gt.s32.totalorder 0, %v1795
        %v1797 = vsel %vm1796, 0, %v1795
        %v1798 = vsub.s32 32, %v1797
        %v1799 = vshll.u32 %v1790, %v1797
        %v1800 = vshrl.u32 %v1782, %v1798
        %v1801 = vor.u32 %v1799, %v1800
        %v1802 = vsub.s32 4294967266, %v1797
        %v1803 = vadd.s32 %v1802, 127
        %v1804 = vshll.u32 %v1803, 23
        %v1805 = vor.u32 4788187, %v1804
        %v1806 = vand.u32 2147483647, %v1805
        %v1808 = vcvt.s32.f32 %v1801
        %v1809 = vmul.f32 %v1808, %v1806
        %v1810 = vxor.u32 %v1809, 2147483648
        %v1811 = vsel %vm1728, %v1810, %v1809
        %v1812 = vsub.s32 4, %v1788
        %v1813 = vsel %vm1728, %v1812, %v1788
        %v1814 = vsel %vm1727, %v1092, %v1811
        %v1815 = vsel %vm1727, 0, %v1813
        %v1816 = vcosq.f32.pop %v1814
        %v1817 = vsinq.f32.pop %v1814
        %vm1818 = vweird.f32 %v1092
        %v1819 = vadd.s32 %v1815, 3
        %v1820 = vand.u32 %v1819, 3
        %vm1821 = vcmp.lt.s32.totalorder %v1820, 2
        %vm1822 = vcmp.eq.s32.totalorder %v1820, 0
        %v1823 = vxor.u32 %v1817, 2147483648
        %v1824 = vsel %vm1822, %v1816, %v1823
        %vm1825 = vcmp.eq.s32.totalorder %v1820, 2
        %v1826 = vxor.u32 %v1816, 2147483648
        %v1827 = vsel %vm1825, %v1826, %v1817
        %v1828 = vsel %vm1821, %v1824, %v1827
        %v1829 = vsel %vm1818, nan, %v1828
        %v1830 = vand.u32 2147483647, %v1093
        %vm1831 = vcmp.le.f32.partialorder %v1830, 0.7853982
        %vm1832 = vcmp.lt.s32.totalorder %v1093, 0
        %v1833 = vand.u32 %v1093, 2139095040
        %v1834 = vshrl.u32 %v1833, 23
        %v1835 = vsub.s32 %v1834, 127
        %v1836 = vand.u32 2147483647, %v1093
        %v1837 = vand.u32 %v1836, 8388607
        %v1838 = vor.u32 %v1837, 8388608
        %v1839 = vsub.s32 0, %v1838
        %v1840 = vadd.s32 %v1835, 1
        %vm1841 = vcmp.gt.s32.totalorder %v1840, 0
        %v1842 = vsel %vm1841, %v1840, 0
        %v1843 = vshrl.u32 %v1842, 5
        %v1844 = vand.u32 %v1842, 31
        %v1845 = vsub.s32 32, %v1844
        %v1846 = vshrl.u32 683565275, %v1845
        %v1847 = vshll.u32 683565275, %v1844
        %v1848 = vshrl.u32 2475754826, %v1845
        %v1849 = vor.u32 %v1847, %v1848
        %v1850 = vshll.u32 2475754826, %v1844
        %v1851 = vshrl.u32 2131351028, %v1845
        %v1852 = vor.u32 %v1850, %v1851
        %v1853 = vshll.u32 2131351028, %v1844
        %v1854 = vshrl.u32 2102212464, %v1845
        %v1855 = vor.u32 %v1853, %v1854
        %v1856 = vshll.u32 2102212464, %v1844
        %v1857 = vshrl.u32 920167782, %v1845
        %v1858 = vor.u32 %v1856, %v1857
        %v1859 = vshll.u32 920167782, %v1844
        %v1860 = vshrl.u32 1326507024, %v1845
        %v1861 = vor.u32 %v1859, %v1860
        %vm1862 = vcmp.lt.s32.totalorder %v1843, 1
        %vm1863 = vcmp.lt.s32.totalorder %v1843, 2
        %vm1864 = vcmp.lt.s32.totalorder %v1843, 3
        %vm1865 = vcmp.lt.s32.totalorder %v1843, 4
        %v1866 = vsel %vm1862, %v1846, %v1849
        %v1867 = vsel %vm1865, %v1855, 2102212464
        %v1868 = vsel %vm1864, %v1852, %v1867
        %v1869 = vsel %vm1863, %v1866, %v1868
        %v1870 = vsel %vm1862, %v1849, %v1852
        %v1871 = vsel %vm1865, %v1858, 920167782
        %v1872 = vsel %vm1864, %v1855, %v1871
        %v1873 = vsel %vm1863, %v1870, %v1872
        %v1874 = vsel %vm1862, %v1852, %v1855
        %v1875 = vsel %vm1865, %v1861, 1326507024
        %v1876 = vsel %vm1864, %v1858, %v1875
        %v1877 = vsel %vm1863, %v1874, %v1876
        %v1878 = vshll.u32 %v1838, 8
        %v1879 = vmul.u32.u64.compose %v1878, %v1877
        %v1880 = vextract.low.u32 %v1879
        %v1881 = vextract.high.u32 %v1879
        %v1882 = vmul.u32.u64.compose %v1878, %v1873
        %v1883 = vextract.low.u32 %v1882
        %v1884 = vextract.high.u32 %v1882
        %v1885 = vmul.u32 %v1878, %v1869
        %v1886 = vadd.s32 %v1881, %v1883
        %vm1887 = vc.u32 %v1881, %v1883
        %v1888 = vadd.s32 %v1884, 1
        %v1889 = vsel %vm1887, %v1888, %v1884
        %v1890 = vadd.s32 %v1885, %v1889
        %v1891 = vadd.s32 %v1890, 536870912
        %v1892 = vshrl.u32 %v1891, 30
        %v1893 = vshll.u32 %v1892, 30
        %v1894 = vsub.s32 %v1890, %v1893
        %vm1895 = vcmp.lt.s32.totalorder %v1894, 0
        %v1896 = vsub.s32 0, %v1894
        %v1897 = vsel %vm1895, %v1896, %v1894
        %v1898 = vclz %v1897
        %v1899 = vsub.s32 %v1898, 2
        %vm1900 = vcmp.gt.s32.totalorder 0, %v1899
        %v1901 = vsel %vm1900, 0, %v1899
        %v1902 = vsub.s32 32, %v1901
        %v1903 = vshll.u32 %v1894, %v1901
        %v1904 = vshrl.u32 %v1886, %v1902
        %v1905 = vor.u32 %v1903, %v1904
        %v1906 = vsub.s32 4294967266, %v1901
        %v1907 = vadd.s32 %v1906, 127
        %v1908 = vshll.u32 %v1907, 23
        %v1909 = vor.u32 4788187, %v1908
        %v1910 = vand.u32 2147483647, %v1909
        %v1912 = vcvt.s32.f32 %v1905
        %v1913 = vmul.f32 %v1912, %v1910
        %v1914 = vxor.u32 %v1913, 2147483648
        %v1915 = vsel %vm1832, %v1914, %v1913
        %v1916 = vsub.s32 4, %v1892
        %v1917 = vsel %vm1832, %v1916, %v1892
        %v1918 = vsel %vm1831, %v1093, %v1915
        %v1919 = vsel %vm1831, 0, %v1917
        %v1920 = vcosq.f32.pop %v1918
        %v1921 = vsinq.f32.pop %v1918
        %vm1922 = vweird.f32 %v1093
        %v1923 = vadd.s32 %v1919, 3
        %v1924 = vand.u32 %v1923, 3
        %vm1925 = vcmp.lt.s32.totalorder %v1924, 2
        %vm1926 = vcmp.eq.s32.totalorder %v1924, 0
        %v1927 = vxor.u32 %v1921, 2147483648
        %v1928 = vsel %vm1926, %v1920, %v1927
        %vm1929 = vcmp.eq.s32.totalorder %v1924, 2
        %v1930 = vxor.u32 %v1920, 2147483648
        %v1931 = vsel %vm1929, %v1930, %v1921
        %v1932 = vsel %vm1925, %v1928, %v1931
        %v1933 = vsel %vm1922, nan, %v1932
        %v1934 = vand.u32 2147483647, %v1094
        %vm1935 = vcmp.le.f32.partialorder %v1934, 0.7853982
        %vm1936 = vcmp.lt.s32.totalorder %v1094, 0
        %v1937 = vand.u32 %v1094, 2139095040
        %v1938 = vshrl.u32 %v1937, 23
        %v1939 = vsub.s32 %v1938, 127
        %v1940 = vand.u32 2147483647, %v1094
        %v1941 = vand.u32 %v1940, 8388607
        %v1942 = vor.u32 %v1941, 8388608
        %v1943 = vsub.s32 0, %v1942
        %v1944 = vadd.s32 %v1939, 1
        %vm1945 = vcmp.gt.s32.totalorder %v1944, 0
        %v1946 = vsel %vm1945, %v1944, 0
        %v1947 = vshrl.u32 %v1946, 5
        %v1948 = vand.u32 %v1946, 31
        %v1949 = vsub.s32 32, %v1948
        %v1950 = vshrl.u32 683565275, %v1949
        %v1951 = vshll.u32 683565275, %v1948
        %v1952 = vshrl.u32 2475754826, %v1949
        %v1953 = vor.u32 %v1951, %v1952
        %v1954 = vshll.u32 2475754826, %v1948
        %v1955 = vshrl.u32 2131351028, %v1949
        %v1956 = vor.u32 %v1954, %v1955
        %v1957 = vshll.u32 2131351028, %v1948
        %v1958 = vshrl.u32 2102212464, %v1949
        %v1959 = vor.u32 %v1957, %v1958
        %v1960 = vshll.u32 2102212464, %v1948
        %v1961 = vshrl.u32 920167782, %v1949
        %v1962 = vor.u32 %v1960, %v1961
        %v1963 = vshll.u32 920167782, %v1948
        %v1964 = vshrl.u32 1326507024, %v1949
        %v1965 = vor.u32 %v1963, %v1964
        %vm1966 = vcmp.lt.s32.totalorder %v1947, 1
        %vm1967 = vcmp.lt.s32.totalorder %v1947, 2
        %vm1968 = vcmp.lt.s32.totalorder %v1947, 3
        %vm1969 = vcmp.lt.s32.totalorder %v1947, 4
        %v1970 = vsel %vm1966, %v1950, %v1953
        %v1971 = vsel %vm1969, %v1959, 2102212464
        %v1972 = vsel %vm1968, %v1956, %v1971
        %v1973 = vsel %vm1967, %v1970, %v1972
        %v1974 = vsel %vm1966, %v1953, %v1956
        %v1975 = vsel %vm1969, %v1962, 920167782
        %v1976 = vsel %vm1968, %v1959, %v1975
        %v1977 = vsel %vm1967, %v1974, %v1976
        %v1978 = vsel %vm1966, %v1956, %v1959
        %v1979 = vsel %vm1969, %v1965, 1326507024
        %v1980 = vsel %vm1968, %v1962, %v1979
        %v1981 = vsel %vm1967, %v1978, %v1980
        %v1982 = vshll.u32 %v1942, 8
        %v1983 = vmul.u32.u64.compose %v1982, %v1981
        %v1984 = vextract.low.u32 %v1983
        %v1985 = vextract.high.u32 %v1983
        %v1986 = vmul.u32.u64.compose %v1982, %v1977
        %v1987 = vextract.low.u32 %v1986
        %v1988 = vextract.high.u32 %v1986
        %v1989 = vmul.u32 %v1982, %v1973
        %v1990 = vadd.s32 %v1985, %v1987
        %vm1991 = vc.u32 %v1985, %v1987
        %v1992 = vadd.s32 %v1988, 1
        %v1993 = vsel %vm1991, %v1992, %v1988
        %v1994 = vadd.s32 %v1989, %v1993
        %v1995 = vadd.s32 %v1994, 536870912
        %v1996 = vshrl.u32 %v1995, 30
        %v1997 = vshll.u32 %v1996, 30
        %v1998 = vsub.s32 %v1994, %v1997
        %vm1999 = vcmp.lt.s32.totalorder %v1998, 0
        %v2000 = vsub.s32 0, %v1998
        %v2001 = vsel %vm1999, %v2000, %v1998
        %v2002 = vclz %v2001
        %v2003 = vsub.s32 %v2002, 2
        %vm2004 = vcmp.gt.s32.totalorder 0, %v2003
        %v2005 = vsel %vm2004, 0, %v2003
        %v2006 = vsub.s32 32, %v2005
        %v2007 = vshll.u32 %v1998, %v2005
        %v2008 = vshrl.u32 %v1990, %v2006
        %v2009 = vor.u32 %v2007, %v2008
        %v2010 = vsub.s32 4294967266, %v2005
        %v2011 = vadd.s32 %v2010, 127
        %v2012 = vshll.u32 %v2011, 23
        %v2013 = vor.u32 4788187, %v2012
        %v2014 = vand.u32 2147483647, %v2013
        %v2016 = vcvt.s32.f32 %v2009
        %v2017 = vmul.f32 %v2016, %v2014
        %v2018 = vxor.u32 %v2017, 2147483648
        %v2019 = vsel %vm1936, %v2018, %v2017
        %v2020 = vsub.s32 4, %v1996
        %v2021 = vsel %vm1936, %v2020, %v1996
        %v2022 = vsel %vm1935, %v1094, %v2019
        %v2023 = vsel %vm1935, 0, %v2021
        %v2024 = vcosq.f32.pop %v2022
        %v2025 = vsinq.f32.pop %v2022
        %vm2026 = vweird.f32 %v1094
        %v2027 = vadd.s32 %v2023, 3
        %v2028 = vand.u32 %v2027, 3
        %vm2029 = vcmp.lt.s32.totalorder %v2028, 2
        %vm2030 = vcmp.eq.s32.totalorder %v2028, 0
        %v2031 = vxor.u32 %v2025, 2147483648
        %v2032 = vsel %vm2030, %v2024, %v2031
        %vm2033 = vcmp.eq.s32.totalorder %v2028, 2
        %v2034 = vxor.u32 %v2024, 2147483648
        %v2035 = vsel %vm2033, %v2034, %v2025
        %v2036 = vsel %vm2029, %v2032, %v2035
        %v2037 = vsel %vm2026, nan, %v2036
        %v2038 = vand.u32 2147483647, %v1095
        %vm2039 = vcmp.le.f32.partialorder %v2038, 0.7853982
        %vm2040 = vcmp.lt.s32.totalorder %v1095, 0
        %v2041 = vand.u32 %v1095, 2139095040
        %v2042 = vshrl.u32 %v2041, 23
        %v2043 = vsub.s32 %v2042, 127
        %v2044 = vand.u32 2147483647, %v1095
        %v2045 = vand.u32 %v2044, 8388607
        %v2046 = vor.u32 %v2045, 8388608
        %v2047 = vsub.s32 0, %v2046
        %v2048 = vadd.s32 %v2043, 1
        %vm2049 = vcmp.gt.s32.totalorder %v2048, 0
        %v2050 = vsel %vm2049, %v2048, 0
        %v2051 = vshrl.u32 %v2050, 5
        %v2052 = vand.u32 %v2050, 31
        %v2053 = vsub.s32 32, %v2052
        %v2054 = vshrl.u32 683565275, %v2053
        %v2055 = vshll.u32 683565275, %v2052
        %v2056 = vshrl.u32 2475754826, %v2053
        %v2057 = vor.u32 %v2055, %v2056
        %v2058 = vshll.u32 2475754826, %v2052
        %v2059 = vshrl.u32 2131351028, %v2053
        %v2060 = vor.u32 %v2058, %v2059
        %v2061 = vshll.u32 2131351028, %v2052
        %v2062 = vshrl.u32 2102212464, %v2053
        %v2063 = vor.u32 %v2061, %v2062
        %v2064 = vshll.u32 2102212464, %v2052
        %v2065 = vshrl.u32 920167782, %v2053
        %v2066 = vor.u32 %v2064, %v2065
        %v2067 = vshll.u32 920167782, %v2052
        %v2068 = vshrl.u32 1326507024, %v2053
        %v2069 = vor.u32 %v2067, %v2068
        %vm2070 = vcmp.lt.s32.totalorder %v2051, 1
        %vm2071 = vcmp.lt.s32.totalorder %v2051, 2
        %vm2072 = vcmp.lt.s32.totalorder %v2051, 3
        %vm2073 = vcmp.lt.s32.totalorder %v2051, 4
        %v2074 = vsel %vm2070, %v2054, %v2057
        %v2075 = vsel %vm2073, %v2063, 2102212464
        %v2076 = vsel %vm2072, %v2060, %v2075
        %v2077 = vsel %vm2071, %v2074, %v2076
        %v2078 = vsel %vm2070, %v2057, %v2060
        %v2079 = vsel %vm2073, %v2066, 920167782
        %v2080 = vsel %vm2072, %v2063, %v2079
        %v2081 = vsel %vm2071, %v2078, %v2080
        %v2082 = vsel %vm2070, %v2060, %v2063
        %v2083 = vsel %vm2073, %v2069, 1326507024
        %v2084 = vsel %vm2072, %v2066, %v2083
        %v2085 = vsel %vm2071, %v2082, %v2084
        %v2086 = vshll.u32 %v2046, 8
        %v2087 = vmul.u32.u64.compose %v2086, %v2085
        %v2088 = vextract.low.u32 %v2087
        %v2089 = vextract.high.u32 %v2087
        %v2090 = vmul.u32.u64.compose %v2086, %v2081
        %v2091 = vextract.low.u32 %v2090
        %v2092 = vextract.high.u32 %v2090
        %v2093 = vmul.u32 %v2086, %v2077
        %v2094 = vadd.s32 %v2089, %v2091
        %vm2095 = vc.u32 %v2089, %v2091
        %v2096 = vadd.s32 %v2092, 1
        %v2097 = vsel %vm2095, %v2096, %v2092
        %v2098 = vadd.s32 %v2093, %v2097
        %v2099 = vadd.s32 %v2098, 536870912
        %v2100 = vshrl.u32 %v2099, 30
        %v2101 = vshll.u32 %v2100, 30
        %v2102 = vsub.s32 %v2098, %v2101
        %vm2103 = vcmp.lt.s32.totalorder %v2102, 0
        %v2104 = vsub.s32 0, %v2102
        %v2105 = vsel %vm2103, %v2104, %v2102
        %v2106 = vclz %v2105
        %v2107 = vsub.s32 %v2106, 2
        %vm2108 = vcmp.gt.s32.totalorder 0, %v2107
        %v2109 = vsel %vm2108, 0, %v2107
        %v2110 = vsub.s32 32, %v2109
        %v2111 = vshll.u32 %v2102, %v2109
        %v2112 = vshrl.u32 %v2094, %v2110
        %v2113 = vor.u32 %v2111, %v2112
        %v2114 = vsub.s32 4294967266, %v2109
        %v2115 = vadd.s32 %v2114, 127
        %v2116 = vshll.u32 %v2115, 23
        %v2117 = vor.u32 4788187, %v2116
        %v2118 = vand.u32 2147483647, %v2117
        %v2120 = vcvt.s32.f32 %v2113
        %v2121 = vmul.f32 %v2120, %v2118
        %v2122 = vxor.u32 %v2121, 2147483648
        %v2123 = vsel %vm2040, %v2122, %v2121
        %v2124 = vsub.s32 4, %v2100
        %v2125 = vsel %vm2040, %v2124, %v2100
        %v2126 = vsel %vm2039, %v1095, %v2123
        %v2127 = vsel %vm2039, 0, %v2125
        %v2128 = vcosq.f32.pop %v2126
        %v2129 = vsinq.f32.pop %v2126
        %vm2130 = vweird.f32 %v1095
        %v2131 = vadd.s32 %v2127, 3
        %v2132 = vand.u32 %v2131, 3
        %vm2133 = vcmp.lt.s32.totalorder %v2132, 2
        %vm2134 = vcmp.eq.s32.totalorder %v2132, 0
        %v2135 = vxor.u32 %v2129, 2147483648
        %v2136 = vsel %vm2134, %v2128, %v2135
        %vm2137 = vcmp.eq.s32.totalorder %v2132, 2
        %v2138 = vxor.u32 %v2128, 2147483648
        %v2139 = vsel %vm2137, %v2138, %v2129
        %v2140 = vsel %vm2133, %v2136, %v2139
        %v2141 = vsel %vm2130, nan, %v2140
        %v2142 = vand.u32 2147483647, %v1096
        %vm2143 = vcmp.le.f32.partialorder %v2142, 0.7853982
        %vm2144 = vcmp.lt.s32.totalorder %v1096, 0
        %v2145 = vand.u32 %v1096, 2139095040
        %v2146 = vshrl.u32 %v2145, 23
        %v2147 = vsub.s32 %v2146, 127
        %v2148 = vand.u32 2147483647, %v1096
        %v2149 = vand.u32 %v2148, 8388607
        %v2150 = vor.u32 %v2149, 8388608
        %v2151 = vsub.s32 0, %v2150
        %v2152 = vadd.s32 %v2147, 1
        %vm2153 = vcmp.gt.s32.totalorder %v2152, 0
        %v2154 = vsel %vm2153, %v2152, 0
        %v2155 = vshrl.u32 %v2154, 5
        %v2156 = vand.u32 %v2154, 31
        %v2157 = vsub.s32 32, %v2156
        %v2158 = vshrl.u32 683565275, %v2157
        %v2159 = vshll.u32 683565275, %v2156
        %v2160 = vshrl.u32 2475754826, %v2157
        %v2161 = vor.u32 %v2159, %v2160
        %v2162 = vshll.u32 2475754826, %v2156
        %v2163 = vshrl.u32 2131351028, %v2157
        %v2164 = vor.u32 %v2162, %v2163
        %v2165 = vshll.u32 2131351028, %v2156
        %v2166 = vshrl.u32 2102212464, %v2157
        %v2167 = vor.u32 %v2165, %v2166
        %v2168 = vshll.u32 2102212464, %v2156
        %v2169 = vshrl.u32 920167782, %v2157
        %v2170 = vor.u32 %v2168, %v2169
        %v2171 = vshll.u32 920167782, %v2156
        %v2172 = vshrl.u32 1326507024, %v2157
        %v2173 = vor.u32 %v2171, %v2172
        %vm2174 = vcmp.lt.s32.totalorder %v2155, 1
        %vm2175 = vcmp.lt.s32.totalorder %v2155, 2
        %vm2176 = vcmp.lt.s32.totalorder %v2155, 3
        %vm2177 = vcmp.lt.s32.totalorder %v2155, 4
        %v2178 = vsel %vm2174, %v2158, %v2161
        %v2179 = vsel %vm2177, %v2167, 2102212464
        %v2180 = vsel %vm2176, %v2164, %v2179
        %v2181 = vsel %vm2175, %v2178, %v2180
        %v2182 = vsel %vm2174, %v2161, %v2164
        %v2183 = vsel %vm2177, %v2170, 920167782
        %v2184 = vsel %vm2176, %v2167, %v2183
        %v2185 = vsel %vm2175, %v2182, %v2184
        %v2186 = vsel %vm2174, %v2164, %v2167
        %v2187 = vsel %vm2177, %v2173, 1326507024
        %v2188 = vsel %vm2176, %v2170, %v2187
        %v2189 = vsel %vm2175, %v2186, %v2188
        %v2190 = vshll.u32 %v2150, 8
        %v2191 = vmul.u32.u64.compose %v2190, %v2189
        %v2192 = vextract.low.u32 %v2191
        %v2193 = vextract.high.u32 %v2191
        %v2194 = vmul.u32.u64.compose %v2190, %v2185
        %v2195 = vextract.low.u32 %v2194
        %v2196 = vextract.high.u32 %v2194
        %v2197 = vmul.u32 %v2190, %v2181
        %v2198 = vadd.s32 %v2193, %v2195
        %vm2199 = vc.u32 %v2193, %v2195
        %v2200 = vadd.s32 %v2196, 1
        %v2201 = vsel %vm2199, %v2200, %v2196
        %v2202 = vadd.s32 %v2197, %v2201
        %v2203 = vadd.s32 %v2202, 536870912
        %v2204 = vshrl.u32 %v2203, 30
        %v2205 = vshll.u32 %v2204, 30
        %v2206 = vsub.s32 %v2202, %v2205
        %vm2207 = vcmp.lt.s32.totalorder %v2206, 0
        %v2208 = vsub.s32 0, %v2206
        %v2209 = vsel %vm2207, %v2208, %v2206
        %v2210 = vclz %v2209
        %v2211 = vsub.s32 %v2210, 2
        %vm2212 = vcmp.gt.s32.totalorder 0, %v2211
        %v2213 = vsel %vm2212, 0, %v2211
        %v2214 = vsub.s32 32, %v2213
        %v2215 = vshll.u32 %v2206, %v2213
        %v2216 = vshrl.u32 %v2198, %v2214
        %v2217 = vor.u32 %v2215, %v2216
        %v2218 = vsub.s32 4294967266, %v2213
        %v2219 = vadd.s32 %v2218, 127
        %v2220 = vshll.u32 %v2219, 23
        %v2221 = vor.u32 4788187, %v2220
        %v2222 = vand.u32 2147483647, %v2221
        %v2224 = vcvt.s32.f32 %v2217
        %v2225 = vmul.f32 %v2224, %v2222
        %v2226 = vxor.u32 %v2225, 2147483648
        %v2227 = vsel %vm2144, %v2226, %v2225
        %v2228 = vsub.s32 4, %v2204
        %v2229 = vsel %vm2144, %v2228, %v2204
        %v2230 = vsel %vm2143, %v1096, %v2227
        %v2231 = vsel %vm2143, 0, %v2229
        %v2232 = vcosq.f32.pop %v2230
        %v2233 = vsinq.f32.pop %v2230
        %vm2234 = vweird.f32 %v1096
        %v2235 = vadd.s32 %v2231, 3
        %v2236 = vand.u32 %v2235, 3
        %vm2237 = vcmp.lt.s32.totalorder %v2236, 2
        %vm2238 = vcmp.eq.s32.totalorder %v2236, 0
        %v2239 = vxor.u32 %v2233, 2147483648
        %v2240 = vsel %vm2238, %v2232, %v2239
        %vm2241 = vcmp.eq.s32.totalorder %v2236, 2
        %v2242 = vxor.u32 %v2232, 2147483648
        %v2243 = vsel %vm2241, %v2242, %v2233
        %v2244 = vsel %vm2237, %v2240, %v2243
        %v2245 = vsel %vm2234, nan, %v2244
        %v2246 = vand.u32 2147483647, %v1097
        %vm2247 = vcmp.le.f32.partialorder %v2246, 0.7853982
        %vm2248 = vcmp.lt.s32.totalorder %v1097, 0
        %v2249 = vand.u32 %v1097, 2139095040
        %v2250 = vshrl.u32 %v2249, 23
        %v2251 = vsub.s32 %v2250, 127
        %v2252 = vand.u32 2147483647, %v1097
        %v2253 = vand.u32 %v2252, 8388607
        %v2254 = vor.u32 %v2253, 8388608
        %v2255 = vsub.s32 0, %v2254
        %v2256 = vadd.s32 %v2251, 1
        %vm2257 = vcmp.gt.s32.totalorder %v2256, 0
        %v2258 = vsel %vm2257, %v2256, 0
        %v2259 = vshrl.u32 %v2258, 5
        %v2260 = vand.u32 %v2258, 31
        %v2261 = vsub.s32 32, %v2260
        %v2262 = vshrl.u32 683565275, %v2261
        %v2263 = vshll.u32 683565275, %v2260
        %v2264 = vshrl.u32 2475754826, %v2261
        %v2265 = vor.u32 %v2263, %v2264
        %v2266 = vshll.u32 2475754826, %v2260
        %v2267 = vshrl.u32 2131351028, %v2261
        %v2268 = vor.u32 %v2266, %v2267
        %v2269 = vshll.u32 2131351028, %v2260
        %v2270 = vshrl.u32 2102212464, %v2261
        %v2271 = vor.u32 %v2269, %v2270
        %v2272 = vshll.u32 2102212464, %v2260
        %v2273 = vshrl.u32 920167782, %v2261
        %v2274 = vor.u32 %v2272, %v2273
        %v2275 = vshll.u32 920167782, %v2260
        %v2276 = vshrl.u32 1326507024, %v2261
        %v2277 = vor.u32 %v2275, %v2276
        %vm2278 = vcmp.lt.s32.totalorder %v2259, 1
        %vm2279 = vcmp.lt.s32.totalorder %v2259, 2
        %vm2280 = vcmp.lt.s32.totalorder %v2259, 3
        %vm2281 = vcmp.lt.s32.totalorder %v2259, 4
        %v2282 = vsel %vm2278, %v2262, %v2265
        %v2283 = vsel %vm2281, %v2271, 2102212464
        %v2284 = vsel %vm2280, %v2268, %v2283
        %v2285 = vsel %vm2279, %v2282, %v2284
        %v2286 = vsel %vm2278, %v2265, %v2268
        %v2287 = vsel %vm2281, %v2274, 920167782
        %v2288 = vsel %vm2280, %v2271, %v2287
        %v2289 = vsel %vm2279, %v2286, %v2288
        %v2290 = vsel %vm2278, %v2268, %v2271
        %v2291 = vsel %vm2281, %v2277, 1326507024
        %v2292 = vsel %vm2280, %v2274, %v2291
        %v2293 = vsel %vm2279, %v2290, %v2292
        %v2294 = vshll.u32 %v2254, 8
        %v2295 = vmul.u32.u64.compose %v2294, %v2293
        %v2296 = vextract.low.u32 %v2295
        %v2297 = vextract.high.u32 %v2295
        %v2298 = vmul.u32.u64.compose %v2294, %v2289
        %v2299 = vextract.low.u32 %v2298
        %v2300 = vextract.high.u32 %v2298
        %v2301 = vmul.u32 %v2294, %v2285
        %v2302 = vadd.s32 %v2297, %v2299
        %vm2303 = vc.u32 %v2297, %v2299
        %v2304 = vadd.s32 %v2300, 1
        %v2305 = vsel %vm2303, %v2304, %v2300
        %v2306 = vadd.s32 %v2301, %v2305
        %v2307 = vadd.s32 %v2306, 536870912
        %v2308 = vshrl.u32 %v2307, 30
        %v2309 = vshll.u32 %v2308, 30
        %v2310 = vsub.s32 %v2306, %v2309
        %vm2311 = vcmp.lt.s32.totalorder %v2310, 0
        %v2312 = vsub.s32 0, %v2310
        %v2313 = vsel %vm2311, %v2312, %v2310
        %v2314 = vclz %v2313
        %v2315 = vsub.s32 %v2314, 2
        %vm2316 = vcmp.gt.s32.totalorder 0, %v2315
        %v2317 = vsel %vm2316, 0, %v2315
        %v2318 = vsub.s32 32, %v2317
        %v2319 = vshll.u32 %v2310, %v2317
        %v2320 = vshrl.u32 %v2302, %v2318
        %v2321 = vor.u32 %v2319, %v2320
        %v2322 = vsub.s32 4294967266, %v2317
        %v2323 = vadd.s32 %v2322, 127
        %v2324 = vshll.u32 %v2323, 23
        %v2325 = vor.u32 4788187, %v2324
        %v2326 = vand.u32 2147483647, %v2325
        %v2328 = vcvt.s32.f32 %v2321
        %v2329 = vmul.f32 %v2328, %v2326
        %v2330 = vxor.u32 %v2329, 2147483648
        %v2331 = vsel %vm2248, %v2330, %v2329
        %v2332 = vsub.s32 4, %v2308
        %v2333 = vsel %vm2248, %v2332, %v2308
        %v2334 = vsel %vm2247, %v1097, %v2331
        %v2335 = vsel %vm2247, 0, %v2333
        %v2336 = vcosq.f32.pop %v2334
        %v2337 = vsinq.f32.pop %v2334
        %vm2338 = vweird.f32 %v1097
        %v2339 = vadd.s32 %v2335, 3
        %v2340 = vand.u32 %v2339, 3
        %vm2341 = vcmp.lt.s32.totalorder %v2340, 2
        %vm2342 = vcmp.eq.s32.totalorder %v2340, 0
        %v2343 = vxor.u32 %v2337, 2147483648
        %v2344 = vsel %vm2342, %v2336, %v2343
        %vm2345 = vcmp.eq.s32.totalorder %v2340, 2
        %v2346 = vxor.u32 %v2336, 2147483648
        %v2347 = vsel %vm2345, %v2346, %v2337
        %v2348 = vsel %vm2341, %v2344, %v2347
        %v2349 = vsel %vm2338, nan, %v2348
        %v2350 = vand.u32 2147483647, %v1098
        %vm2351 = vcmp.le.f32.partialorder %v2350, 0.7853982
        %vm2352 = vcmp.lt.s32.totalorder %v1098, 0
        %v2353 = vand.u32 %v1098, 2139095040
        %v2354 = vshrl.u32 %v2353, 23
        %v2355 = vsub.s32 %v2354, 127
        %v2356 = vand.u32 2147483647, %v1098
        %v2357 = vand.u32 %v2356, 8388607
        %v2358 = vor.u32 %v2357, 8388608
        %v2359 = vsub.s32 0, %v2358
        %v2360 = vadd.s32 %v2355, 1
        %vm2361 = vcmp.gt.s32.totalorder %v2360, 0
        %v2362 = vsel %vm2361, %v2360, 0
        %v2363 = vshrl.u32 %v2362, 5
        %v2364 = vand.u32 %v2362, 31
        %v2365 = vsub.s32 32, %v2364
        %v2366 = vshrl.u32 683565275, %v2365
        %v2367 = vshll.u32 683565275, %v2364
        %v2368 = vshrl.u32 2475754826, %v2365
        %v2369 = vor.u32 %v2367, %v2368
        %v2370 = vshll.u32 2475754826, %v2364
        %v2371 = vshrl.u32 2131351028, %v2365
        %v2372 = vor.u32 %v2370, %v2371
        %v2373 = vshll.u32 2131351028, %v2364
        %v2374 = vshrl.u32 2102212464, %v2365
        %v2375 = vor.u32 %v2373, %v2374
        %v2376 = vshll.u32 2102212464, %v2364
        %v2377 = vshrl.u32 920167782, %v2365
        %v2378 = vor.u32 %v2376, %v2377
        %v2379 = vshll.u32 920167782, %v2364
        %v2380 = vshrl.u32 1326507024, %v2365
        %v2381 = vor.u32 %v2379, %v2380
        %vm2382 = vcmp.lt.s32.totalorder %v2363, 1
        %vm2383 = vcmp.lt.s32.totalorder %v2363, 2
        %vm2384 = vcmp.lt.s32.totalorder %v2363, 3
        %vm2385 = vcmp.lt.s32.totalorder %v2363, 4
        %v2386 = vsel %vm2382, %v2366, %v2369
        %v2387 = vsel %vm2385, %v2375, 2102212464
        %v2388 = vsel %vm2384, %v2372, %v2387
        %v2389 = vsel %vm2383, %v2386, %v2388
        %v2390 = vsel %vm2382, %v2369, %v2372
        %v2391 = vsel %vm2385, %v2378, 920167782
        %v2392 = vsel %vm2384, %v2375, %v2391
        %v2393 = vsel %vm2383, %v2390, %v2392
        %v2394 = vsel %vm2382, %v2372, %v2375
        %v2395 = vsel %vm2385, %v2381, 1326507024
        %v2396 = vsel %vm2384, %v2378, %v2395
        %v2397 = vsel %vm2383, %v2394, %v2396
        %v2398 = vshll.u32 %v2358, 8
        %v2399 = vmul.u32.u64.compose %v2398, %v2397
        %v2400 = vextract.low.u32 %v2399
        %v2401 = vextract.high.u32 %v2399
        %v2402 = vmul.u32.u64.compose %v2398, %v2393
        %v2403 = vextract.low.u32 %v2402
        %v2404 = vextract.high.u32 %v2402
        %v2405 = vmul.u32 %v2398, %v2389
        %v2406 = vadd.s32 %v2401, %v2403
        %vm2407 = vc.u32 %v2401, %v2403
        %v2408 = vadd.s32 %v2404, 1
        %v2409 = vsel %vm2407, %v2408, %v2404
        %v2410 = vadd.s32 %v2405, %v2409
        %v2411 = vadd.s32 %v2410, 536870912
        %v2412 = vshrl.u32 %v2411, 30
        %v2413 = vshll.u32 %v2412, 30
        %v2414 = vsub.s32 %v2410, %v2413
        %vm2415 = vcmp.lt.s32.totalorder %v2414, 0
        %v2416 = vsub.s32 0, %v2414
        %v2417 = vsel %vm2415, %v2416, %v2414
        %v2418 = vclz %v2417
        %v2419 = vsub.s32 %v2418, 2
        %vm2420 = vcmp.gt.s32.totalorder 0, %v2419
        %v2421 = vsel %vm2420, 0, %v2419
        %v2422 = vsub.s32 32, %v2421
        %v2423 = vshll.u32 %v2414, %v2421
        %v2424 = vshrl.u32 %v2406, %v2422
        %v2425 = vor.u32 %v2423, %v2424
        %v2426 = vsub.s32 4294967266, %v2421
        %v2427 = vadd.s32 %v2426, 127
        %v2428 = vshll.u32 %v2427, 23
        %v2429 = vor.u32 4788187, %v2428
        %v2430 = vand.u32 2147483647, %v2429
        %v2432 = vcvt.s32.f32 %v2425
        %v2433 = vmul.f32 %v2432, %v2430
        %v2434 = vxor.u32 %v2433, 2147483648
        %v2435 = vsel %vm2352, %v2434, %v2433
        %v2436 = vsub.s32 4, %v2412
        %v2437 = vsel %vm2352, %v2436, %v2412
        %v2438 = vsel %vm2351, %v1098, %v2435
        %v2439 = vsel %vm2351, 0, %v2437
        %v2440 = vcosq.f32.pop %v2438
        %v2441 = vsinq.f32.pop %v2438
        %vm2442 = vweird.f32 %v1098
        %v2443 = vadd.s32 %v2439, 3
        %v2444 = vand.u32 %v2443, 3
        %vm2445 = vcmp.lt.s32.totalorder %v2444, 2
        %vm2446 = vcmp.eq.s32.totalorder %v2444, 0
        %v2447 = vxor.u32 %v2441, 2147483648
        %v2448 = vsel %vm2446, %v2440, %v2447
        %vm2449 = vcmp.eq.s32.totalorder %v2444, 2
        %v2450 = vxor.u32 %v2440, 2147483648
        %v2451 = vsel %vm2449, %v2450, %v2441
        %v2452 = vsel %vm2445, %v2448, %v2451
        %v2453 = vsel %vm2442, nan, %v2452
        %v2454 = vand.u32 2147483647, %v1099
        %vm2455 = vcmp.le.f32.partialorder %v2454, 0.7853982
        %vm2456 = vcmp.lt.s32.totalorder %v1099, 0
        %v2457 = vand.u32 %v1099, 2139095040
        %v2458 = vshrl.u32 %v2457, 23
        %v2459 = vsub.s32 %v2458, 127
        %v2460 = vand.u32 2147483647, %v1099
        %v2461 = vand.u32 %v2460, 8388607
        %v2462 = vor.u32 %v2461, 8388608
        %v2463 = vsub.s32 0, %v2462
        %v2464 = vadd.s32 %v2459, 1
        %vm2465 = vcmp.gt.s32.totalorder %v2464, 0
        %v2466 = vsel %vm2465, %v2464, 0
        %v2467 = vshrl.u32 %v2466, 5
        %v2468 = vand.u32 %v2466, 31
        %v2469 = vsub.s32 32, %v2468
        %v2470 = vshrl.u32 683565275, %v2469
        %v2471 = vshll.u32 683565275, %v2468
        %v2472 = vshrl.u32 2475754826, %v2469
        %v2473 = vor.u32 %v2471, %v2472
        %v2474 = vshll.u32 2475754826, %v2468
        %v2475 = vshrl.u32 2131351028, %v2469
        %v2476 = vor.u32 %v2474, %v2475
        %v2477 = vshll.u32 2131351028, %v2468
        %v2478 = vshrl.u32 2102212464, %v2469
        %v2479 = vor.u32 %v2477, %v2478
        %v2480 = vshll.u32 2102212464, %v2468
        %v2481 = vshrl.u32 920167782, %v2469
        %v2482 = vor.u32 %v2480, %v2481
        %v2483 = vshll.u32 920167782, %v2468
        %v2484 = vshrl.u32 1326507024, %v2469
        %v2485 = vor.u32 %v2483, %v2484
        %vm2486 = vcmp.lt.s32.totalorder %v2467, 1
        %vm2487 = vcmp.lt.s32.totalorder %v2467, 2
        %vm2488 = vcmp.lt.s32.totalorder %v2467, 3
        %vm2489 = vcmp.lt.s32.totalorder %v2467, 4
        %v2490 = vsel %vm2486, %v2470, %v2473
        %v2491 = vsel %vm2489, %v2479, 2102212464
        %v2492 = vsel %vm2488, %v2476, %v2491
        %v2493 = vsel %vm2487, %v2490, %v2492
        %v2494 = vsel %vm2486, %v2473, %v2476
        %v2495 = vsel %vm2489, %v2482, 920167782
        %v2496 = vsel %vm2488, %v2479, %v2495
        %v2497 = vsel %vm2487, %v2494, %v2496
        %v2498 = vsel %vm2486, %v2476, %v2479
        %v2499 = vsel %vm2489, %v2485, 1326507024
        %v2500 = vsel %vm2488, %v2482, %v2499
        %v2501 = vsel %vm2487, %v2498, %v2500
        %v2502 = vshll.u32 %v2462, 8
        %v2503 = vmul.u32.u64.compose %v2502, %v2501
        %v2504 = vextract.low.u32 %v2503
        %v2505 = vextract.high.u32 %v2503
        %v2506 = vmul.u32.u64.compose %v2502, %v2497
        %v2507 = vextract.low.u32 %v2506
        %v2508 = vextract.high.u32 %v2506
        %v2509 = vmul.u32 %v2502, %v2493
        %v2510 = vadd.s32 %v2505, %v2507
        %vm2511 = vc.u32 %v2505, %v2507
        %v2512 = vadd.s32 %v2508, 1
        %v2513 = vsel %vm2511, %v2512, %v2508
        %v2514 = vadd.s32 %v2509, %v2513
        %v2515 = vadd.s32 %v2514, 536870912
        %v2516 = vshrl.u32 %v2515, 30
        %v2517 = vshll.u32 %v2516, 30
        %v2518 = vsub.s32 %v2514, %v2517
        %vm2519 = vcmp.lt.s32.totalorder %v2518, 0
        %v2520 = vsub.s32 0, %v2518
        %v2521 = vsel %vm2519, %v2520, %v2518
        %v2522 = vclz %v2521
        %v2523 = vsub.s32 %v2522, 2
        %vm2524 = vcmp.gt.s32.totalorder 0, %v2523
        %v2525 = vsel %vm2524, 0, %v2523
        %v2526 = vsub.s32 32, %v2525
        %v2527 = vshll.u32 %v2518, %v2525
        %v2528 = vshrl.u32 %v2510, %v2526
        %v2529 = vor.u32 %v2527, %v2528
        %v2530 = vsub.s32 4294967266, %v2525
        %v2531 = vadd.s32 %v2530, 127
        %v2532 = vshll.u32 %v2531, 23
        %v2533 = vor.u32 4788187, %v2532
        %v2534 = vand.u32 2147483647, %v2533
        %v2536 = vcvt.s32.f32 %v2529
        %v2537 = vmul.f32 %v2536, %v2534
        %v2538 = vxor.u32 %v2537, 2147483648
        %v2539 = vsel %vm2456, %v2538, %v2537
        %v2540 = vsub.s32 4, %v2516
        %v2541 = vsel %vm2456, %v2540, %v2516
        %v2542 = vsel %vm2455, %v1099, %v2539
        %v2543 = vsel %vm2455, 0, %v2541
        %v2544 = vcosq.f32.pop %v2542
        %v2545 = vsinq.f32.pop %v2542
        %vm2546 = vweird.f32 %v1099
        %v2547 = vadd.s32 %v2543, 3
        %v2548 = vand.u32 %v2547, 3
        %vm2549 = vcmp.lt.s32.totalorder %v2548, 2
        %vm2550 = vcmp.eq.s32.totalorder %v2548, 0
        %v2551 = vxor.u32 %v2545, 2147483648
        %v2552 = vsel %vm2550, %v2544, %v2551
        %vm2553 = vcmp.eq.s32.totalorder %v2548, 2
        %v2554 = vxor.u32 %v2544, 2147483648
        %v2555 = vsel %vm2553, %v2554, %v2545
        %v2556 = vsel %vm2549, %v2552, %v2555
        %v2557 = vsel %vm2546, nan, %v2556
        %v2558 = vand.u32 2147483647, %v1100
        %vm2559 = vcmp.le.f32.partialorder %v2558, 0.7853982
        %vm2560 = vcmp.lt.s32.totalorder %v1100, 0
        %v2561 = vand.u32 %v1100, 2139095040
        %v2562 = vshrl.u32 %v2561, 23
        %v2563 = vsub.s32 %v2562, 127
        %v2564 = vand.u32 2147483647, %v1100
        %v2565 = vand.u32 %v2564, 8388607
        %v2566 = vor.u32 %v2565, 8388608
        %v2567 = vsub.s32 0, %v2566
        %v2568 = vadd.s32 %v2563, 1
        %vm2569 = vcmp.gt.s32.totalorder %v2568, 0
        %v2570 = vsel %vm2569, %v2568, 0
        %v2571 = vshrl.u32 %v2570, 5
        %v2572 = vand.u32 %v2570, 31
        %v2573 = vsub.s32 32, %v2572
        %v2574 = vshrl.u32 683565275, %v2573
        %v2575 = vshll.u32 683565275, %v2572
        %v2576 = vshrl.u32 2475754826, %v2573
        %v2577 = vor.u32 %v2575, %v2576
        %v2578 = vshll.u32 2475754826, %v2572
        %v2579 = vshrl.u32 2131351028, %v2573
        %v2580 = vor.u32 %v2578, %v2579
        %v2581 = vshll.u32 2131351028, %v2572
        %v2582 = vshrl.u32 2102212464, %v2573
        %v2583 = vor.u32 %v2581, %v2582
        %v2584 = vshll.u32 2102212464, %v2572
        %v2585 = vshrl.u32 920167782, %v2573
        %v2586 = vor.u32 %v2584, %v2585
        %v2587 = vshll.u32 920167782, %v2572
        %v2588 = vshrl.u32 1326507024, %v2573
        %v2589 = vor.u32 %v2587, %v2588
        %vm2590 = vcmp.lt.s32.totalorder %v2571, 1
        %vm2591 = vcmp.lt.s32.totalorder %v2571, 2
        %vm2592 = vcmp.lt.s32.totalorder %v2571, 3
        %vm2593 = vcmp.lt.s32.totalorder %v2571, 4
        %v2594 = vsel %vm2590, %v2574, %v2577
        %v2595 = vsel %vm2593, %v2583, 2102212464
        %v2596 = vsel %vm2592, %v2580, %v2595
        %v2597 = vsel %vm2591, %v2594, %v2596
        %v2598 = vsel %vm2590, %v2577, %v2580
        %v2599 = vsel %vm2593, %v2586, 920167782
        %v2600 = vsel %vm2592, %v2583, %v2599
        %v2601 = vsel %vm2591, %v2598, %v2600
        %v2602 = vsel %vm2590, %v2580, %v2583
        %v2603 = vsel %vm2593, %v2589, 1326507024
        %v2604 = vsel %vm2592, %v2586, %v2603
        %v2605 = vsel %vm2591, %v2602, %v2604
        %v2606 = vshll.u32 %v2566, 8
        %v2607 = vmul.u32.u64.compose %v2606, %v2605
        %v2608 = vextract.low.u32 %v2607
        %v2609 = vextract.high.u32 %v2607
        %v2610 = vmul.u32.u64.compose %v2606, %v2601
        %v2611 = vextract.low.u32 %v2610
        %v2612 = vextract.high.u32 %v2610
        %v2613 = vmul.u32 %v2606, %v2597
        %v2614 = vadd.s32 %v2609, %v2611
        %vm2615 = vc.u32 %v2609, %v2611
        %v2616 = vadd.s32 %v2612, 1
        %v2617 = vsel %vm2615, %v2616, %v2612
        %v2618 = vadd.s32 %v2613, %v2617
        %v2619 = vadd.s32 %v2618, 536870912
        %v2620 = vshrl.u32 %v2619, 30
        %v2621 = vshll.u32 %v2620, 30
        %v2622 = vsub.s32 %v2618, %v2621
        %vm2623 = vcmp.lt.s32.totalorder %v2622, 0
        %v2624 = vsub.s32 0, %v2622
        %v2625 = vsel %vm2623, %v2624, %v2622
        %v2626 = vclz %v2625
        %v2627 = vsub.s32 %v2626, 2
        %vm2628 = vcmp.gt.s32.totalorder 0, %v2627
        %v2629 = vsel %vm2628, 0, %v2627
        %v2630 = vsub.s32 32, %v2629
        %v2631 = vshll.u32 %v2622, %v2629
        %v2632 = vshrl.u32 %v2614, %v2630
        %v2633 = vor.u32 %v2631, %v2632
        %v2634 = vsub.s32 4294967266, %v2629
        %v2635 = vadd.s32 %v2634, 127
        %v2636 = vshll.u32 %v2635, 23
        %v2637 = vor.u32 4788187, %v2636
        %v2638 = vand.u32 2147483647, %v2637
        %v2640 = vcvt.s32.f32 %v2633
        %v2641 = vmul.f32 %v2640, %v2638
        %v2642 = vxor.u32 %v2641, 2147483648
        %v2643 = vsel %vm2560, %v2642, %v2641
        %v2644 = vsub.s32 4, %v2620
        %v2645 = vsel %vm2560, %v2644, %v2620
        %v2646 = vsel %vm2559, %v1100, %v2643
        %v2647 = vsel %vm2559, 0, %v2645
        %v2648 = vcosq.f32.pop %v2646
        %v2649 = vsinq.f32.pop %v2646
        %vm2650 = vweird.f32 %v1100
        %v2651 = vadd.s32 %v2647, 3
        %v2652 = vand.u32 %v2651, 3
        %vm2653 = vcmp.lt.s32.totalorder %v2652, 2
        %vm2654 = vcmp.eq.s32.totalorder %v2652, 0
        %v2655 = vxor.u32 %v2649, 2147483648
        %v2656 = vsel %vm2654, %v2648, %v2655
        %vm2657 = vcmp.eq.s32.totalorder %v2652, 2
        %v2658 = vxor.u32 %v2648, 2147483648
        %v2659 = vsel %vm2657, %v2658, %v2649
        %v2660 = vsel %vm2653, %v2656, %v2659
        %v2661 = vsel %vm2650, nan, %v2660
        %v2662 = vand.u32 2147483647, %v1101
        %vm2663 = vcmp.le.f32.partialorder %v2662, 0.7853982
        %vm2664 = vcmp.lt.s32.totalorder %v1101, 0
        %v2665 = vand.u32 %v1101, 2139095040
        %v2666 = vshrl.u32 %v2665, 23
        %v2667 = vsub.s32 %v2666, 127
        %v2668 = vand.u32 2147483647, %v1101
        %v2669 = vand.u32 %v2668, 8388607
        %v2670 = vor.u32 %v2669, 8388608
        %v2671 = vsub.s32 0, %v2670
        %v2672 = vadd.s32 %v2667, 1
        %vm2673 = vcmp.gt.s32.totalorder %v2672, 0
        %v2674 = vsel %vm2673, %v2672, 0
        %v2675 = vshrl.u32 %v2674, 5
        %v2676 = vand.u32 %v2674, 31
        %v2677 = vsub.s32 32, %v2676
        %v2678 = vshrl.u32 683565275, %v2677
        %v2679 = vshll.u32 683565275, %v2676
        %v2680 = vshrl.u32 2475754826, %v2677
        %v2681 = vor.u32 %v2679, %v2680
        %v2682 = vshll.u32 2475754826, %v2676
        %v2683 = vshrl.u32 2131351028, %v2677
        %v2684 = vor.u32 %v2682, %v2683
        %v2685 = vshll.u32 2131351028, %v2676
        %v2686 = vshrl.u32 2102212464, %v2677
        %v2687 = vor.u32 %v2685, %v2686
        %v2688 = vshll.u32 2102212464, %v2676
        %v2689 = vshrl.u32 920167782, %v2677
        %v2690 = vor.u32 %v2688, %v2689
        %v2691 = vshll.u32 920167782, %v2676
        %v2692 = vshrl.u32 1326507024, %v2677
        %v2693 = vor.u32 %v2691, %v2692
        %vm2694 = vcmp.lt.s32.totalorder %v2675, 1
        %vm2695 = vcmp.lt.s32.totalorder %v2675, 2
        %vm2696 = vcmp.lt.s32.totalorder %v2675, 3
        %vm2697 = vcmp.lt.s32.totalorder %v2675, 4
        %v2698 = vsel %vm2694, %v2678, %v2681
        %v2699 = vsel %vm2697, %v2687, 2102212464
        %v2700 = vsel %vm2696, %v2684, %v2699
        %v2701 = vsel %vm2695, %v2698, %v2700
        %v2702 = vsel %vm2694, %v2681, %v2684
        %v2703 = vsel %vm2697, %v2690, 920167782
        %v2704 = vsel %vm2696, %v2687, %v2703
        %v2705 = vsel %vm2695, %v2702, %v2704
        %v2706 = vsel %vm2694, %v2684, %v2687
        %v2707 = vsel %vm2697, %v2693, 1326507024
        %v2708 = vsel %vm2696, %v2690, %v2707
        %v2709 = vsel %vm2695, %v2706, %v2708
        %v2710 = vshll.u32 %v2670, 8
        %v2711 = vmul.u32.u64.compose %v2710, %v2709
        %v2712 = vextract.low.u32 %v2711
        %v2713 = vextract.high.u32 %v2711
        %v2714 = vmul.u32.u64.compose %v2710, %v2705
        %v2715 = vextract.low.u32 %v2714
        %v2716 = vextract.high.u32 %v2714
        %v2717 = vmul.u32 %v2710, %v2701
        %v2718 = vadd.s32 %v2713, %v2715
        %vm2719 = vc.u32 %v2713, %v2715
        %v2720 = vadd.s32 %v2716, 1
        %v2721 = vsel %vm2719, %v2720, %v2716
        %v2722 = vadd.s32 %v2717, %v2721
        %v2723 = vadd.s32 %v2722, 536870912
        %v2724 = vshrl.u32 %v2723, 30
        %v2725 = vshll.u32 %v2724, 30
        %v2726 = vsub.s32 %v2722, %v2725
        %vm2727 = vcmp.lt.s32.totalorder %v2726, 0
        %v2728 = vsub.s32 0, %v2726
        %v2729 = vsel %vm2727, %v2728, %v2726
        %v2730 = vclz %v2729
        %v2731 = vsub.s32 %v2730, 2
        %vm2732 = vcmp.gt.s32.totalorder 0, %v2731
        %v2733 = vsel %vm2732, 0, %v2731
        %v2734 = vsub.s32 32, %v2733
        %v2735 = vshll.u32 %v2726, %v2733
        %v2736 = vshrl.u32 %v2718, %v2734
        %v2737 = vor.u32 %v2735, %v2736
        %v2738 = vsub.s32 4294967266, %v2733
        %v2739 = vadd.s32 %v2738, 127
        %v2740 = vshll.u32 %v2739, 23
        %v2741 = vor.u32 4788187, %v2740
        %v2742 = vand.u32 2147483647, %v2741
        %v2744 = vcvt.s32.f32 %v2737
        %v2745 = vmul.f32 %v2744, %v2742
        %v2746 = vxor.u32 %v2745, 2147483648
        %v2747 = vsel %vm2664, %v2746, %v2745
        %v2748 = vsub.s32 4, %v2724
        %v2749 = vsel %vm2664, %v2748, %v2724
        %v2750 = vsel %vm2663, %v1101, %v2747
        %v2751 = vsel %vm2663, 0, %v2749
        %v2752 = vcosq.f32.pop %v2750
        %v2753 = vsinq.f32.pop %v2750
        %vm2754 = vweird.f32 %v1101
        %v2755 = vadd.s32 %v2751, 3
        %v2756 = vand.u32 %v2755, 3
        %vm2757 = vcmp.lt.s32.totalorder %v2756, 2
        %vm2758 = vcmp.eq.s32.totalorder %v2756, 0
        %v2759 = vxor.u32 %v2753, 2147483648
        %v2760 = vsel %vm2758, %v2752, %v2759
        %vm2761 = vcmp.eq.s32.totalorder %v2756, 2
        %v2762 = vxor.u32 %v2752, 2147483648
        %v2763 = vsel %vm2761, %v2762, %v2753
        %v2764 = vsel %vm2757, %v2760, %v2763
        %v2765 = vsel %vm2754, nan, %v2764
        %v2766 = vsel %vm638, 1, 0
        %v2767 = vsel %vm639, 1, 0
        %v2768 = vsel %vm640, 1, 0
        %v2769 = vsel %vm641, 1, 0
        %v2770 = vsel %vm642, 1, 0
        %v2771 = vsel %vm643, 1, 0
        %v2772 = vsel %vm644, 1, 0
        %v2773 = vsel %vm645, 1, 0
        %v2774 = vsel %vm646, 1, 0
        %v2775 = vsel %vm647, 1, 0
        %v2776 = vsel %vm648, 1, 0
        %v2777 = vsel %vm649, 1, 0
        %v2778 = vsel %vm650, 1, 0
        %v2779 = vsel %vm651, 1, 0
        %v2780 = vsel %vm652, 1, 0
        %v2781 = vsel %vm653, 1, 0
        %vm2782 = vcmp.eq.s32.totalorder %v2766, 1
        %vm2783 = vcmp.eq.s32.totalorder %v2767, 1
        %vm2784 = vcmp.eq.s32.totalorder %v2768, 1
        %vm2785 = vcmp.eq.s32.totalorder %v2769, 1
        %vm2786 = vcmp.eq.s32.totalorder %v2770, 1
        %vm2787 = vcmp.eq.s32.totalorder %v2771, 1
        %vm2788 = vcmp.eq.s32.totalorder %v2772, 1
        %vm2789 = vcmp.eq.s32.totalorder %v2773, 1
        %vm2790 = vcmp.eq.s32.totalorder %v2774, 1
        %vm2791 = vcmp.eq.s32.totalorder %v2775, 1
        %vm2792 = vcmp.eq.s32.totalorder %v2776, 1
        %vm2793 = vcmp.eq.s32.totalorder %v2777, 1
        %vm2794 = vcmp.eq.s32.totalorder %v2778, 1
        %vm2795 = vcmp.eq.s32.totalorder %v2779, 1
        %vm2796 = vcmp.eq.s32.totalorder %v2780, 1
        %vm2797 = vcmp.eq.s32.totalorder %v2781, 1
        %v2798 = vsel %vm2782, %v900, %v1205
        %v2799 = vsel %vm2783, %v905, %v1309
        %v2800 = vsel %vm2784, %v910, %v1413
        %v2801 = vsel %vm2785, %v915, %v1517
        %v2802 = vsel %vm2786, %v920, %v1621
        %v2803 = vsel %vm2787, %v925, %v1725
        %v2804 = vsel %vm2788, %v930, %v1829
        %v2805 = vsel %vm2789, %v935, %v1933
        %v2806 = vsel %vm2790, %v940, %v2037
        %v2807 = vsel %vm2791, %v945, %v2141
        %v2808 = vsel %vm2792, %v950, %v2245
        %v2809 = vsel %vm2793, %v955, %v2349
        %v2810 = vsel %vm2794, %v960, %v2453
        %v2811 = vsel %vm2795, %v965, %v2557
        %v2812 = vsel %vm2796, %v970, %v2661
        %v2813 = vsel %vm2797, %v975, %v2765
        %2814 = vst [vmem:[%s191] sm:$0xff] %v2798
        %2815 = vst [vmem:[%s191 + $0x8] sm:$0xff] %v2799
        %2816 = vst [vmem:[%s191 + $0x10] sm:$0xff] %v2800
        %2817 = vst [vmem:[%s191 + $0x18] sm:$0xff] %v2801
        %2818 = vst [vmem:[%s191 + $0x20] sm:$0xff] %v2802
        %2819 = vst [vmem:[%s191 + $0x28] sm:$0xff] %v2803
        %2820 = vst [vmem:[%s191 + $0x30] sm:$0xff] %v2804
        %2821 = vst [vmem:[%s191 + $0x38] sm:$0xff] %v2805
        %2822 = vst [vmem:[%s191 + $0x40] sm:$0xff] %v2806
        %2823 = vst [vmem:[%s191 + $0x48] sm:$0xff] %v2807
        %2824 = vst [vmem:[%s191 + $0x50] sm:$0xff] %v2808
        %2825 = vst [vmem:[%s191 + $0x58] sm:$0xff] %v2809
        %2826 = vst [vmem:[%s191 + $0x60] sm:$0xff] %v2810
        %2827 = vst [vmem:[%s191 + $0x68] sm:$0xff] %v2811
        %2828 = vst [vmem:[%s191 + $0x70] sm:$0xff] %v2812
        %2829 = vst [vmem:[%s191 + $0x78] sm:$0xff] %v2813
        %s2830 = sand.u32 %s115, 1
        %s2831 = scalar_lea.sflag [#allocation3], %s2830
        %s2832 = sand.u32 %s115, 1
        %s2833 = smul.addr %s2832, 128
        %s2834 = scalar_lea.vmem [#allocation2], %s2833
        // Predicated region
        $region37: #{tpu_custom_call.1} parent=35 // pred_check
          %p2835 = pneg %p125
        $region38: #{tpu_custom_call.1} parent=35 // pred_check_branch
          %2837 = sbr.rel (%p2835) target = $region40
        $region39: #{tpu_custom_call.1} parent=35 // pred_region
          %s2838 = smul.u32 16, %s18
          %s2840 = ssub.s32 2048, 2048
          %2841 = vsyncadd %s2831, %s2840
          %s2842 = smul.addr %s2838, 128
          %s2843 = scalar_lea.hbm %s4, %s2842
          %s2844 = sshll.u32 %s2834, 4
          %s2845 = int_to_ptr.vmem [resolvable:$true] %s2844
          %2850 = dma.vmem_to_hbm [thread:$0]  %s2845, 2048, %s2843, %s2831, 128, 128, 8
        $region40: #{tpu_custom_call.1} parent=35 // pred_fallthru
          _
      $region36: #{tpu_custom_call.1} parent=5 // pred_fallthru
        _
      %p2851 = scmp.le.s32.totalorder 2, %s13
      // Predicated region
      $region41: #{tpu_custom_call.1} parent=5 // pred_check
        %p2852 = pneg %p2851
      $region42: #{tpu_custom_call.1} parent=5 // pred_check_branch
        %2854 = sbr.rel (%p2852) target = $region44
      $region43: #{tpu_custom_call.1} parent=5 // pred_region
        %s2855 = ssub.s32 %s13, 2
        // Predicated region
        $region45: #{tpu_custom_call.1} parent=43 // pred_check
          %p2856 = pneg %p131
        $region46: #{tpu_custom_call.1} parent=43 // pred_check_branch
          %2858 = sbr.rel (%p2856) target = $region48
        $region47: #{tpu_custom_call.1} parent=43 // pred_region
          %s2859 = sand.u32 %s116, 1
          %s2860 = scalar_lea.sflag [#allocation3], %s2859
          %s2861 = sand.u32 %s116, 1
          %s2862 = smul.addr %s2861, 128
          %s2863 = scalar_lea.vmem [#allocation2], %s2862
          %2864 = dma.done %s2860, 2048
        $region48: #{tpu_custom_call.1} parent=43 // pred_fallthru
          _
      $region44: #{tpu_custom_call.1} parent=5 // pred_fallthru
        _
    $region6: #{tpu_custom_call.1} parent=1 // loop_footer
      %s17 = sadd.s32 1, %s13
    $region7: #{tpu_custom_call.1} parent=1 // loop_footer_branch
      %12 = sbr.rel target = $region3
    $region8: #{tpu_custom_call.1} parent=1 // loop_exit
      _
    %2865 = vsyncpa [#allocation3], 1
    %s2866 = scalar_lea.sflag [#allocation3], 1
    %2867 = vsyncpa %s2866, 1

</llo_original>
